<compile_context>
chip_gen: v7x
topology: tpu7x:2x2x1
jax: 0.10.0
libtpu: 0.0.40
codegen_flags: <defaults>
</compile_context>

<pallas_src>
import jax
import jax.numpy as jnp
from jax.experimental import pallas as pl
from jax.experimental.pallas import tpu as pltpu

HIDDEN = 50          # LSTM hidden size (PyTorch module)
HP = 128             # lane-aligned padded hidden size (one gate slab = 128 lanes)
HANDCRAFTED = 34     # handcrafted feature count (PyTorch module)
HANDP = 128          # lane-aligned padded handcrafted width
MLP_H = 64           # MLP hidden width
OUTP = 128           # lane-dense padded output width (logical output is 1)
BATCH_TILE = 8       # per-grid-step batch rows (sublane-aligned)


def _lstm_mlp_kernel(x_ref, hand_ref,
                     w_ih_ref, w_hh_ref, b_ref,
                     w1h_ref, w1hand_ref, b1_ref,
                     w2_ref, b2_ref, w3_ref, b3_ref,
                     out_ref, xw_ref):
    """One batch tile: LSTM over T steps (h, c carried in vregs, T unrolled),
    last hidden state fed to a 3-layer MLP head.  Gate slabs are 128 lanes,
    packed [i, f, o, g]; per-step gate inputs come from an aligned VMEM slab."""
    TB, _ = x_ref.shape                 # TB = T * BT (time-major, flattened)
    BT = out_ref.shape[0]               # padded batch rows in this tile
    T = TB // BT

    # ---- Hoisted input projection: one matmul for all T steps (+ bias once).
    xw_ref[...] = (jnp.dot(x_ref[...], w_ih_ref[...],
                           preferred_element_type=jnp.float32) + b_ref[...])

    # ---- Handcrafted-feature branch, off the serial critical path. ----------
    hand_proj = jnp.dot(hand_ref[...], w1hand_ref[...],
                        preferred_element_type=jnp.float32) + b1_ref[...]

    # ---- Peeled t = 0 step: h = c = 0  =>  no h@w_hh matmul, no f*c term. ---
    g0 = xw_ref[0:BT, :]                             # (BT, 4*HP), tile-aligned
    s0 = jax.nn.sigmoid(g0[:, 0:3 * HP])             # [i | f | o] in one slab
    c = s0[:, 0 * HP:1 * HP] * jnp.tanh(g0[:, 3 * HP:4 * HP])
    h = s0[:, 2 * HP:3 * HP] * jnp.tanh(c)

    # ---- Remaining steps, fully unrolled (T static and small). --------------
    for t in range(1, T):
        g = xw_ref[t * BT:(t + 1) * BT, :] + jnp.dot(
            h, w_hh_ref[...], preferred_element_type=jnp.float32)
        s = jax.nn.sigmoid(g[:, 0:3 * HP])           # gates packed [i, f, o]
        i_g = s[:, 0 * HP:1 * HP]
        f_g = s[:, 1 * HP:2 * HP]
        o_g = s[:, 2 * HP:3 * HP]
        g_g = jnp.tanh(g[:, 3 * HP:4 * HP])
        c = f_g * c + i_g * g_g
        h = o_g * jnp.tanh(c)

    # ---- MLP head (concat replaced by split W1; lane-dense output slab). ----
    z1 = jnp.maximum(
        jnp.dot(h, w1h_ref[...], preferred_element_type=jnp.float32) + hand_proj,
        0.0)
    z2 = jnp.maximum(
        jnp.dot(z1, w2_ref[...], preferred_element_type=jnp.float32) + b2_ref[...],
        0.0)
    out_ref[...] = (jnp.dot(z2, w3_ref[...], preferred_element_type=jnp.float32)
                    + b3_ref[...])


def model_lstm_feature_forward(inputs, handcrafted, padded_params,
                               batch_tile=BATCH_TILE):
    """inputs: (B, T, F) batch_first; handcrafted: (B, 34).  Returns (B, 1)."""
    B, T, F = inputs.shape
    BT = batch_tile                       # multiple of 8 (sublane tile)
    NB = -(-B // BT)                      # number of batch tiles (grid size)
    BP = NB * BT

    # Pad batch to the tile size; pad rows compute garbage but rows are
    # independent everywhere, so real rows are unaffected.
    x = jnp.pad(inputs.astype(jnp.float32), ((0, BP - B), (0, 0), (0, 0)))
    # Time-major within each batch tile, flattened: (NB, T*BT, F).
    x = x.reshape(NB, BT, T, F).transpose(0, 2, 1, 3).reshape(NB, T * BT, F)

    hand = jnp.pad(handcrafted.astype(jnp.float32),
                   ((0, BP - B), (0, HANDP - HANDCRAFTED)))
    hand = hand.reshape(NB, BT, HANDP)

    pp = padded_params
    wspec = lambda w: pl.BlockSpec(w.shape, lambda b: (0, 0))  # weights resident

    grid_spec = pltpu.PrefetchScalarGridSpec(
        num_scalar_prefetch=0,
        grid=(NB,),
        in_specs=[
            pl.BlockSpec((None, T * BT, F), lambda b: (b, 0, 0)),
            pl.BlockSpec((None, BT, HANDP), lambda b: (b, 0, 0)),
            wspec(pp["w_ih"]), wspec(pp["w_hh"]), wspec(pp["b_lstm"]),
            wspec(pp["w1_h"]), wspec(pp["w1_hand"]), wspec(pp["b1"]),
            wspec(pp["w2"]), wspec(pp["b2"]), wspec(pp["w3"]), wspec(pp["b3"]),
        ],
        out_specs=pl.BlockSpec((None, BT, OUTP), lambda b: (b, 0, 0)),
        scratch_shapes=[pltpu.VMEM((T * BT, 4 * HP), jnp.float32)],
    )

    out = pl.pallas_call(
        _lstm_mlp_kernel,
        out_shape=jax.ShapeDtypeStruct((NB, BT, OUTP), jnp.float32),
        grid_spec=grid_spec,
        compiler_params=pltpu.CompilerParams(
            dimension_semantics=("parallel",)),
    )(
        x, hand,
        pp["w_ih"], pp["w_hh"], pp["b_lstm"],
        pp["w1_h"], pp["w1_hand"], pp["b1"],
        pp["w2"], pp["b2"], pp["w3"], pp["b3"],
    )
    return out.reshape(BP, OUTP)[:B, :1]


def init_params(key, ori_feature_num):
    """Deterministic parameters mirroring the PyTorch module, pre-transposed to
    (in, out) so kernels compute x @ W.  Unpadded (logical) layout; LSTM gates
    in PyTorch order [i, f, g, o]."""
    F, H = ori_feature_num, HIDDEN
    ks = jax.random.split(key, 10)

    def u(k, shape, scale):
        return jax.random.uniform(k, shape, jnp.float32, -scale, scale)

    k_lstm = 1.0 / jnp.sqrt(H)
    return {
        # LSTM: weight_ih (4H,F) -> (F,4H), weight_hh (4H,H) -> (H,4H), biases summed
        "w_ih": u(ks[0], (F, 4 * H), k_lstm),
        "w_hh": u(ks[1], (H, 4 * H), k_lstm),
        "b_lstm": (u(ks[2], (1, 4 * H), k_lstm) + u(ks[3], (1, 4 * H), k_lstm)),
        # Linear(84 -> 64), Linear(64 -> 64), Linear(64 -> 1)
        "w1": u(ks[4], (H + HANDCRAFTED, MLP_H), 1.0 / jnp.sqrt(H + HANDCRAFTED)),
        "b1": u(ks[5], (1, MLP_H), 1.0 / jnp.sqrt(H + HANDCRAFTED)),
        "w2": u(ks[6], (MLP_H, MLP_H), 1.0 / jnp.sqrt(float(MLP_H))),
        "b2": u(ks[7], (1, MLP_H), 1.0 / jnp.sqrt(float(MLP_H))),
        "w3": u(ks[8], (MLP_H, 1), 1.0 / jnp.sqrt(float(MLP_H))),
        "b3": u(ks[9], (1, 1), 1.0 / jnp.sqrt(float(MLP_H))),
    }


def pad_params(p):
    """Lane-align LSTM weights: each gate slab padded 50 -> 128 lanes and the
    gates repacked from PyTorch order [i, f, g, o] to [i, f, o, g] so the three
    sigmoid gates form one contiguous slab.  Pad regions are zero, so padded
    hidden lanes stay identically zero through the recurrence.  W1 is split
    into its hidden-state and handcrafted halves; w3/b3 are padded to a
    lane-dense 128-wide output (pad columns zero)."""
    F = p["w_ih"].shape[0]
    H = HIDDEN
    w_ih_p = jnp.zeros((F, 4 * HP), jnp.float32)
    w_hh_p = jnp.zeros((HP, 4 * HP), jnp.float32)
    b_p = jnp.zeros((1, 4 * HP), jnp.float32)
    # dst slab -> src gate (PyTorch order i=0, f=1, g=2, o=3); pack [i, f, o, g].
    for dst, src in enumerate((0, 1, 3, 2)):
        w_ih_p = w_ih_p.at[:, dst * HP:dst * HP + H].set(
            p["w_ih"][:, src * H:(src + 1) * H])
        w_hh_p = w_hh_p.at[:H, dst * HP:dst * HP + H].set(
            p["w_hh"][:, src * H:(src + 1) * H])
        b_p = b_p.at[:, dst * HP:dst * HP + H].set(
            p["b_lstm"][:, src * H:(src + 1) * H])
    w1_h = jnp.zeros((HP, MLP_H), jnp.float32).at[:H].set(p["w1"][:H])
    w1_hand = jnp.zeros((HANDP, MLP_H), jnp.float32).at[:HANDCRAFTED].set(p["w1"][H:])
    w3_p = jnp.zeros((MLP_H, OUTP), jnp.float32).at[:, :1].set(p["w3"])
    b3_p = jnp.zeros((1, OUTP), jnp.float32).at[:, :1].set(p["b3"])
    return {
        "w_ih": w_ih_p, "w_hh": w_hh_p, "b_lstm": b_p,
        "w1_h": w1_h, "w1_hand": w1_hand, "b1": p["b1"],
        "w2": p["w2"], "b2": p["b2"], "w3": w3_p, "b3": b3_p,
    }


def reference_forward(inputs, handcrafted, params):
    """Pure-JAX reference (mirrors PyTorch nn.LSTM + nn.Sequential forward).
    Note: nn.LSTM dropout is a no-op with num_layers=1 / at inference."""
    B, T, F = inputs.shape
    H = HIDDEN
    h = jnp.zeros((B, H), jnp.float32)
    c = jnp.zeros((B, H), jnp.float32)
    for t in range(T):
        g = inputs[:, t, :] @ params["w_ih"] + h @ params["w_hh"] + params["b_lstm"]
        i_g = jax.nn.sigmoid(g[:, 0 * H:1 * H])
        f_g = jax.nn.sigmoid(g[:, 1 * H:2 * H])
        g_g = jnp.tanh(g[:, 2 * H:3 * H])
        o_g = jax.nn.sigmoid(g[:, 3 * H:4 * H])
        c = f_g * c + i_g * g_g
        h = o_g * jnp.tanh(c)
    comb = jnp.concatenate([h, handcrafted], axis=1)
    z1 = jnp.maximum(comb @ params["w1"] + params["b1"], 0.0)
    z2 = jnp.maximum(z1 @ params["w2"] + params["b2"], 0.0)
    return z2 @ params["w3"] + params["b3"]


if __name__ == "__main__":
    # Small shapes consistent with the module: window_size=8, ori_feature_num=16
    B, T, F = 2, 8, 16
    key = jax.random.PRNGKey(0)
    k_x, k_h, k_p = jax.random.split(key, 3)

    inputs = jax.random.normal(k_x, (B, T, F), jnp.float32)
    handcrafted = jax.random.normal(k_h, (B, HANDCRAFTED), jnp.float32)
    params = init_params(k_p, F)
    padded = pad_params(params)

    out = model_lstm_feature_forward(inputs, handcrafted, padded)
    out = jax.block_until_ready(out)

    ref = reference_forward(inputs, handcrafted, params)
    assert out.shape == (B, 1)
    assert jnp.allclose(out, ref, atol=1e-4, rtol=1e-4), (out, ref)

    print("KERNEL_OK")
</pallas_src>

<mosaic_0001>
module attributes {stable_mosaic.version = 11 : i64} {
  func.func @_lstm_mlp_kernel(%arg0: i32, %arg1: memref<1x64x16xf32, #tpu.memory_space<vmem>>, %arg2: memref<1x8x128xf32, #tpu.memory_space<vmem>>, %arg3: memref<16x512xf32, #tpu.memory_space<vmem>>, %arg4: memref<128x512xf32, #tpu.memory_space<vmem>>, %arg5: memref<1x512xf32, #tpu.memory_space<vmem>>, %arg6: memref<128x64xf32, #tpu.memory_space<vmem>>, %arg7: memref<128x64xf32, #tpu.memory_space<vmem>>, %arg8: memref<1x64xf32, #tpu.memory_space<vmem>>, %arg9: memref<64x64xf32, #tpu.memory_space<vmem>>, %arg10: memref<1x64xf32, #tpu.memory_space<vmem>>, %arg11: memref<64x128xf32, #tpu.memory_space<vmem>>, %arg12: memref<1x128xf32, #tpu.memory_space<vmem>>, %arg13: memref<1x8x128xf32, #tpu.memory_space<vmem>>, %arg14: memref<64x512xf32, #tpu.memory_space<vmem>>) attributes {dimension_semantics = [#tpu.dimension_semantics<parallel>], iteration_bounds = array<i64: 1>, scalar_prefetch = 0 : i64, scratch_operands = 1 : i64, tpu.core_type = #tpu.core_type<tc>, window_params = [{transform_indices = @transform_0, window_bounds = array<i64: 1, 64, 16>}, {transform_indices = @transform_1, window_bounds = array<i64: 1, 8, 128>}, {pipeline_mode = #tpu.pipeline_mode<synchronous>, transform_indices = @transform_2, window_bounds = array<i64: 16, 512>}, {pipeline_mode = #tpu.pipeline_mode<synchronous>, transform_indices = @transform_3, window_bounds = array<i64: 128, 512>}, {pipeline_mode = #tpu.pipeline_mode<synchronous>, transform_indices = @transform_4, window_bounds = array<i64: 1, 512>}, {pipeline_mode = #tpu.pipeline_mode<synchronous>, transform_indices = @transform_5, window_bounds = array<i64: 128, 64>}, {pipeline_mode = #tpu.pipeline_mode<synchronous>, transform_indices = @transform_6, window_bounds = array<i64: 128, 64>}, {pipeline_mode = #tpu.pipeline_mode<synchronous>, transform_indices = @transform_7, window_bounds = array<i64: 1, 64>}, {pipeline_mode = #tpu.pipeline_mode<synchronous>, transform_indices = @transform_8, window_bounds = array<i64: 64, 64>}, {pipeline_mode = #tpu.pipeline_mode<synchronous>, transform_indices = @transform_9, window_bounds = array<i64: 1, 64>}, {pipeline_mode = #tpu.pipeline_mode<synchronous>, transform_indices = @transform_10, window_bounds = array<i64: 64, 128>}, {pipeline_mode = #tpu.pipeline_mode<synchronous>, transform_indices = @transform_11, window_bounds = array<i64: 1, 128>}, {transform_indices = @transform_12, window_bounds = array<i64: 1, 8, 128>}]} {
    %c0 = arith.constant 0 : index
    %c0_0 = arith.constant 0 : index
    %c0_1 = arith.constant 0 : index
    %0 = vector.load %arg1[%c0, %c0_0, %c0_1] : memref<1x64x16xf32, #tpu.memory_space<vmem>>, vector<1x64x16xf32>
    %1 = vector.shape_cast %0 : vector<1x64x16xf32> to vector<64x16xf32>
    %c0_2 = arith.constant 0 : index
    %c0_3 = arith.constant 0 : index
    %2 = vector.load %arg3[%c0_2, %c0_3] : memref<16x512xf32, #tpu.memory_space<vmem>>, vector<16x512xf32>
    %cst = arith.constant dense<0.000000e+00> : vector<64x512xf32>
    %3 = tpu.matmul %1, %2, %cst {dimension_numbers = #tpu.dot_dimension_numbers<[1], [0], [0], [1], [0, 0, 1, 1], [], []>} : vector<64x16xf32>, vector<16x512xf32>, vector<64x512xf32> -> vector<64x512xf32>
    %c0_4 = arith.constant 0 : index
    %c0_5 = arith.constant 0 : index
    %4 = vector.load %arg5[%c0_4, %c0_5] : memref<1x512xf32, #tpu.memory_space<vmem>>, vector<1x512xf32>
    %5 = vector.broadcast %4 : vector<1x512xf32> to vector<64x512xf32>
    %6 = arith.addf %3, %5 : vector<64x512xf32>
    %c0_6 = arith.constant 0 : index
    %c0_7 = arith.constant 0 : index
    %7 = vector.load %arg14[%c0_6, %c0_7] : memref<64x512xf32, #tpu.memory_space<vmem>>, vector<64x512xf32>
    tpu.vector_store %arg14[%c0_6, %c0_7], %6 {strides = array<i32>} : memref<64x512xf32, #tpu.memory_space<vmem>>, vector<64x512xf32>,
    %c0_8 = arith.constant 0 : index
    %c0_9 = arith.constant 0 : index
    %c0_10 = arith.constant 0 : index
    %8 = vector.load %arg2[%c0_8, %c0_9, %c0_10] : memref<1x8x128xf32, #tpu.memory_space<vmem>>, vector<1x8x128xf32>
    %9 = vector.shape_cast %8 : vector<1x8x128xf32> to vector<8x128xf32>
    %c0_11 = arith.constant 0 : index
    %c0_12 = arith.constant 0 : index
    %10 = vector.load %arg7[%c0_11, %c0_12] : memref<128x64xf32, #tpu.memory_space<vmem>>, vector<128x64xf32>
    %cst_13 = arith.constant dense<0.000000e+00> : vector<8x64xf32>
    %11 = tpu.matmul %9, %10, %cst_13 {dimension_numbers = #tpu.dot_dimension_numbers<[1], [0], [0], [1], [0, 0, 1, 1], [], []>} : vector<8x128xf32>, vector<128x64xf32>, vector<8x64xf32> -> vector<8x64xf32>
    %c0_14 = arith.constant 0 : index
    %c0_15 = arith.constant 0 : index
    %12 = vector.load %arg8[%c0_14, %c0_15] : memref<1x64xf32, #tpu.memory_space<vmem>>, vector<1x64xf32>
    %13 = vector.broadcast %12 : vector<1x64xf32> to vector<8x64xf32>
    %14 = arith.addf %11, %13 : vector<8x64xf32>
    %c0_16 = arith.constant 0 : index
    %c0_17 = arith.constant 0 : index
    %15 = vector.load %arg14[%c0_16, %c0_17] : memref<64x512xf32, #tpu.memory_space<vmem>>, vector<8x512xf32>
    %16 = vector.extract_strided_slice %15 {offsets = [0, 0], sizes = [8, 384], strides = [1, 1]} : vector<8x512xf32> to vector<8x384xf32>
    %17 = arith.negf %16 : vector<8x384xf32>
    %18 = math.exp %17 : vector<8x384xf32>
    %cst_18 = arith.constant 1.000000e+00 : f32
    %19 = vector.broadcast %cst_18 : f32 to vector<8x384xf32>
    %20 = arith.addf %19, %18 : vector<8x384xf32>
    %21 = arith.divf %19, %20 : vector<8x384xf32>
    %22 = vector.extract_strided_slice %21 {offsets = [0, 0], sizes = [8, 128], strides = [1, 1]} : vector<8x384xf32> to vector<8x128xf32>
    %23 = vector.extract_strided_slice %15 {offsets = [0, 384], sizes = [8, 128], strides = [1, 1]} : vector<8x512xf32> to vector<8x128xf32>
    %24 = math.tanh %23 : vector<8x128xf32>
    %25 = arith.mulf %22, %24 : vector<8x128xf32>
    %26 = vector.extract_strided_slice %21 {offsets = [0, 256], sizes = [8, 128], strides = [1, 1]} : vector<8x384xf32> to vector<8x128xf32>
    %27 = math.tanh %25 : vector<8x128xf32>
    %28 = arith.mulf %26, %27 : vector<8x128xf32>
    %c8 = arith.constant 8 : index
    %c0_19 = arith.constant 0 : index
    %29 = vector.load %arg14[%c8, %c0_19] : memref<64x512xf32, #tpu.memory_space<vmem>>, vector<8x512xf32>
    %c0_20 = arith.constant 0 : index
    %c0_21 = arith.constant 0 : index
    %30 = vector.load %arg4[%c0_20, %c0_21] : memref<128x512xf32, #tpu.memory_space<vmem>>, vector<128x512xf32>
    %cst_22 = arith.constant dense<0.000000e+00> : vector<8x512xf32>
    %31 = tpu.matmul %28, %30, %cst_22 {dimension_numbers = #tpu.dot_dimension_numbers<[1], [0], [0], [1], [0, 0, 1, 1], [], []>} : vector<8x128xf32>, vector<128x512xf32>, vector<8x512xf32> -> vector<8x512xf32>
    %32 = arith.addf %29, %31 : vector<8x512xf32>
    %33 = vector.extract_strided_slice %32 {offsets = [0, 0], sizes = [8, 384], strides = [1, 1]} : vector<8x512xf32> to vector<8x384xf32>
    %34 = arith.negf %33 : vector<8x384xf32>
    %35 = math.exp %34 : vector<8x384xf32>
    %cst_23 = arith.constant 1.000000e+00 : f32
    %36 = vector.broadcast %cst_23 : f32 to vector<8x384xf32>
    %37 = arith.addf %36, %35 : vector<8x384xf32>
    %38 = arith.divf %36, %37 : vector<8x384xf32>
    %39 = vector.extract_strided_slice %38 {offsets = [0, 0], sizes = [8, 128], strides = [1, 1]} : vector<8x384xf32> to vector<8x128xf32>
    %40 = vector.extract_strided_slice %38 {offsets = [0, 128], sizes = [8, 128], strides = [1, 1]} : vector<8x384xf32> to vector<8x128xf32>
    %41 = vector.extract_strided_slice %38 {offsets = [0, 256], sizes = [8, 128], strides = [1, 1]} : vector<8x384xf32> to vector<8x128xf32>
    %42 = vector.extract_strided_slice %32 {offsets = [0, 384], sizes = [8, 128], strides = [1, 1]} : vector<8x512xf32> to vector<8x128xf32>
    %43 = math.tanh %42 : vector<8x128xf32>
    %44 = arith.mulf %40, %25 : vector<8x128xf32>
    %45 = arith.mulf %39, %43 : vector<8x128xf32>
    %46 = arith.addf %44, %45 : vector<8x128xf32>
    %47 = math.tanh %46 : vector<8x128xf32>
    %48 = arith.mulf %41, %47 : vector<8x128xf32>
    %c16 = arith.constant 16 : index
    %c0_24 = arith.constant 0 : index
    %49 = vector.load %arg14[%c16, %c0_24] : memref<64x512xf32, #tpu.memory_space<vmem>>, vector<8x512xf32>
    %c0_25 = arith.constant 0 : index
    %c0_26 = arith.constant 0 : index
    %50 = vector.load %arg4[%c0_25, %c0_26] : memref<128x512xf32, #tpu.memory_space<vmem>>, vector<128x512xf32>
    %cst_27 = arith.constant dense<0.000000e+00> : vector<8x512xf32>
    %51 = tpu.matmul %48, %50, %cst_27 {dimension_numbers = #tpu.dot_dimension_numbers<[1], [0], [0], [1], [0, 0, 1, 1], [], []>} : vector<8x128xf32>, vector<128x512xf32>, vector<8x512xf32> -> vector<8x512xf32>
    %52 = arith.addf %49, %51 : vector<8x512xf32>
    %53 = vector.extract_strided_slice %52 {offsets = [0, 0], sizes = [8, 384], strides = [1, 1]} : vector<8x512xf32> to vector<8x384xf32>
    %54 = arith.negf %53 : vector<8x384xf32>
    %55 = math.exp %54 : vector<8x384xf32>
    %cst_28 = arith.constant 1.000000e+00 : f32
    %56 = vector.broadcast %cst_28 : f32 to vector<8x384xf32>
    %57 = arith.addf %56, %55 : vector<8x384xf32>
    %58 = arith.divf %56, %57 : vector<8x384xf32>
    %59 = vector.extract_strided_slice %58 {offsets = [0, 0], sizes = [8, 128], strides = [1, 1]} : vector<8x384xf32> to vector<8x128xf32>
    %60 = vector.extract_strided_slice %58 {offsets = [0, 128], sizes = [8, 128], strides = [1, 1]} : vector<8x384xf32> to vector<8x128xf32>
    %61 = vector.extract_strided_slice %58 {offsets = [0, 256], sizes = [8, 128], strides = [1, 1]} : vector<8x384xf32> to vector<8x128xf32>
    %62 = vector.extract_strided_slice %52 {offsets = [0, 384], sizes = [8, 128], strides = [1, 1]} : vector<8x512xf32> to vector<8x128xf32>
    %63 = math.tanh %62 : vector<8x128xf32>
    %64 = arith.mulf %60, %46 : vector<8x128xf32>
    %65 = arith.mulf %59, %63 : vector<8x128xf32>
    %66 = arith.addf %64, %65 : vector<8x128xf32>
    %67 = math.tanh %66 : vector<8x128xf32>
    %68 = arith.mulf %61, %67 : vector<8x128xf32>
    %c24 = arith.constant 24 : index
    %c0_29 = arith.constant 0 : index
    %69 = vector.load %arg14[%c24, %c0_29] : memref<64x512xf32, #tpu.memory_space<vmem>>, vector<8x512xf32>
    %c0_30 = arith.constant 0 : index
    %c0_31 = arith.constant 0 : index
    %70 = vector.load %arg4[%c0_30, %c0_31] : memref<128x512xf32, #tpu.memory_space<vmem>>, vector<128x512xf32>
    %cst_32 = arith.constant dense<0.000000e+00> : vector<8x512xf32>
    %71 = tpu.matmul %68, %70, %cst_32 {dimension_numbers = #tpu.dot_dimension_numbers<[1], [0], [0], [1], [0, 0, 1, 1], [], []>} : vector<8x128xf32>, vector<128x512xf32>, vector<8x512xf32> -> vector<8x512xf32>
    %72 = arith.addf %69, %71 : vector<8x512xf32>
    %73 = vector.extract_strided_slice %72 {offsets = [0, 0], sizes = [8, 384], strides = [1, 1]} : vector<8x512xf32> to vector<8x384xf32>
    %74 = arith.negf %73 : vector<8x384xf32>
    %75 = math.exp %74 : vector<8x384xf32>
    %cst_33 = arith.constant 1.000000e+00 : f32
    %76 = vector.broadcast %cst_33 : f32 to vector<8x384xf32>
    %77 = arith.addf %76, %75 : vector<8x384xf32>
    %78 = arith.divf %76, %77 : vector<8x384xf32>
    %79 = vector.extract_strided_slice %78 {offsets = [0, 0], sizes = [8, 128], strides = [1, 1]} : vector<8x384xf32> to vector<8x128xf32>
    %80 = vector.extract_strided_slice %78 {offsets = [0, 128], sizes = [8, 128], strides = [1, 1]} : vector<8x384xf32> to vector<8x128xf32>
    %81 = vector.extract_strided_slice %78 {offsets = [0, 256], sizes = [8, 128], strides = [1, 1]} : vector<8x384xf32> to vector<8x128xf32>
    %82 = vector.extract_strided_slice %72 {offsets = [0, 384], sizes = [8, 128], strides = [1, 1]} : vector<8x512xf32> to vector<8x128xf32>
    %83 = math.tanh %82 : vector<8x128xf32>
    %84 = arith.mulf %80, %66 : vector<8x128xf32>
    %85 = arith.mulf %79, %83 : vector<8x128xf32>
    %86 = arith.addf %84, %85 : vector<8x128xf32>
    %87 = math.tanh %86 : vector<8x128xf32>
    %88 = arith.mulf %81, %87 : vector<8x128xf32>
    %c32 = arith.constant 32 : index
    %c0_34 = arith.constant 0 : index
    %89 = vector.load %arg14[%c32, %c0_34] : memref<64x512xf32, #tpu.memory_space<vmem>>, vector<8x512xf32>
    %c0_35 = arith.constant 0 : index
    %c0_36 = arith.constant 0 : index
    %90 = vector.load %arg4[%c0_35, %c0_36] : memref<128x512xf32, #tpu.memory_space<vmem>>, vector<128x512xf32>
    %cst_37 = arith.constant dense<0.000000e+00> : vector<8x512xf32>
    %91 = tpu.matmul %88, %90, %cst_37 {dimension_numbers = #tpu.dot_dimension_numbers<[1], [0], [0], [1], [0, 0, 1, 1], [], []>} : vector<8x128xf32>, vector<128x512xf32>, vector<8x512xf32> -> vector<8x512xf32>
    %92 = arith.addf %89, %91 : vector<8x512xf32>
    %93 = vector.extract_strided_slice %92 {offsets = [0, 0], sizes = [8, 384], strides = [1, 1]} : vector<8x512xf32> to vector<8x384xf32>
    %94 = arith.negf %93 : vector<8x384xf32>
    %95 = math.exp %94 : vector<8x384xf32>
    %cst_38 = arith.constant 1.000000e+00 : f32
    %96 = vector.broadcast %cst_38 : f32 to vector<8x384xf32>
    %97 = arith.addf %96, %95 : vector<8x384xf32>
    %98 = arith.divf %96, %97 : vector<8x384xf32>
    %99 = vector.extract_strided_slice %98 {offsets = [0, 0], sizes = [8, 128], strides = [1, 1]} : vector<8x384xf32> to vector<8x128xf32>
    %100 = vector.extract_strided_slice %98 {offsets = [0, 128], sizes = [8, 128], strides = [1, 1]} : vector<8x384xf32> to vector<8x128xf32>
    %101 = vector.extract_strided_slice %98 {offsets = [0, 256], sizes = [8, 128], strides = [1, 1]} : vector<8x384xf32> to vector<8x128xf32>
    %102 = vector.extract_strided_slice %92 {offsets = [0, 384], sizes = [8, 128], strides = [1, 1]} : vector<8x512xf32> to vector<8x128xf32>
    %103 = math.tanh %102 : vector<8x128xf32>
    %104 = arith.mulf %100, %86 : vector<8x128xf32>
    %105 = arith.mulf %99, %103 : vector<8x128xf32>
    %106 = arith.addf %104, %105 : vector<8x128xf32>
    %107 = math.tanh %106 : vector<8x128xf32>
    %108 = arith.mulf %101, %107 : vector<8x128xf32>
    %c40 = arith.constant 40 : index
    %c0_39 = arith.constant 0 : index
    %109 = vector.load %arg14[%c40, %c0_39] : memref<64x512xf32, #tpu.memory_space<vmem>>, vector<8x512xf32>
    %c0_40 = arith.constant 0 : index
    %c0_41 = arith.constant 0 : index
    %110 = vector.load %arg4[%c0_40, %c0_41] : memref<128x512xf32, #tpu.memory_space<vmem>>, vector<128x512xf32>
    %cst_42 = arith.constant dense<0.000000e+00> : vector<8x512xf32>
    %111 = tpu.matmul %108, %110, %cst_42 {dimension_numbers = #tpu.dot_dimension_numbers<[1], [0], [0], [1], [0, 0, 1, 1], [], []>} : vector<8x128xf32>, vector<128x512xf32>, vector<8x512xf32> -> vector<8x512xf32>
    %112 = arith.addf %109, %111 : vector<8x512xf32>
    %113 = vector.extract_strided_slice %112 {offsets = [0, 0], sizes = [8, 384], strides = [1, 1]} : vector<8x512xf32> to vector<8x384xf32>
    %114 = arith.negf %113 : vector<8x384xf32>
    %115 = math.exp %114 : vector<8x384xf32>
    %cst_43 = arith.constant 1.000000e+00 : f32
    %116 = vector.broadcast %cst_43 : f32 to vector<8x384xf32>
    %117 = arith.addf %116, %115 : vector<8x384xf32>
    %118 = arith.divf %116, %117 : vector<8x384xf32>
    %119 = vector.extract_strided_slice %118 {offsets = [0, 0], sizes = [8, 128], strides = [1, 1]} : vector<8x384xf32> to vector<8x128xf32>
    %120 = vector.extract_strided_slice %118 {offsets = [0, 128], sizes = [8, 128], strides = [1, 1]} : vector<8x384xf32> to vector<8x128xf32>
    %121 = vector.extract_strided_slice %118 {offsets = [0, 256], sizes = [8, 128], strides = [1, 1]} : vector<8x384xf32> to vector<8x128xf32>
    %122 = vector.extract_strided_slice %112 {offsets = [0, 384], sizes = [8, 128], strides = [1, 1]} : vector<8x512xf32> to vector<8x128xf32>
    %123 = math.tanh %122 : vector<8x128xf32>
    %124 = arith.mulf %120, %106 : vector<8x128xf32>
    %125 = arith.mulf %119, %123 : vector<8x128xf32>
    %126 = arith.addf %124, %125 : vector<8x128xf32>
    %127 = math.tanh %126 : vector<8x128xf32>
    %128 = arith.mulf %121, %127 : vector<8x128xf32>
    %c48 = arith.constant 48 : index
    %c0_44 = arith.constant 0 : index
    %129 = vector.load %arg14[%c48, %c0_44] : memref<64x512xf32, #tpu.memory_space<vmem>>, vector<8x512xf32>
    %c0_45 = arith.constant 0 : index
    %c0_46 = arith.constant 0 : index
    %130 = vector.load %arg4[%c0_45, %c0_46] : memref<128x512xf32, #tpu.memory_space<vmem>>, vector<128x512xf32>
    %cst_47 = arith.constant dense<0.000000e+00> : vector<8x512xf32>
    %131 = tpu.matmul %128, %130, %cst_47 {dimension_numbers = #tpu.dot_dimension_numbers<[1], [0], [0], [1], [0, 0, 1, 1], [], []>} : vector<8x128xf32>, vector<128x512xf32>, vector<8x512xf32> -> vector<8x512xf32>
    %132 = arith.addf %129, %131 : vector<8x512xf32>
    %133 = vector.extract_strided_slice %132 {offsets = [0, 0], sizes = [8, 384], strides = [1, 1]} : vector<8x512xf32> to vector<8x384xf32>
    %134 = arith.negf %133 : vector<8x384xf32>
    %135 = math.exp %134 : vector<8x384xf32>
    %cst_48 = arith.constant 1.000000e+00 : f32
    %136 = vector.broadcast %cst_48 : f32 to vector<8x384xf32>
    %137 = arith.addf %136, %135 : vector<8x384xf32>
    %138 = arith.divf %136, %137 : vector<8x384xf32>
    %139 = vector.extract_strided_slice %138 {offsets = [0, 0], sizes = [8, 128], strides = [1, 1]} : vector<8x384xf32> to vector<8x128xf32>
    %140 = vector.extract_strided_slice %138 {offsets = [0, 128], sizes = [8, 128], strides = [1, 1]} : vector<8x384xf32> to vector<8x128xf32>
    %141 = vector.extract_strided_slice %138 {offsets = [0, 256], sizes = [8, 128], strides = [1, 1]} : vector<8x384xf32> to vector<8x128xf32>
    %142 = vector.extract_strided_slice %132 {offsets = [0, 384], sizes = [8, 128], strides = [1, 1]} : vector<8x512xf32> to vector<8x128xf32>
    %143 = math.tanh %142 : vector<8x128xf32>
    %144 = arith.mulf %140, %126 : vector<8x128xf32>
    %145 = arith.mulf %139, %143 : vector<8x128xf32>
    %146 = arith.addf %144, %145 : vector<8x128xf32>
    %147 = math.tanh %146 : vector<8x128xf32>
    %148 = arith.mulf %141, %147 : vector<8x128xf32>
    %c56 = arith.constant 56 : index
    %c0_49 = arith.constant 0 : index
    %149 = vector.load %arg14[%c56, %c0_49] : memref<64x512xf32, #tpu.memory_space<vmem>>, vector<8x512xf32>
    %c0_50 = arith.constant 0 : index
    %c0_51 = arith.constant 0 : index
    %150 = vector.load %arg4[%c0_50, %c0_51] : memref<128x512xf32, #tpu.memory_space<vmem>>, vector<128x512xf32>
    %cst_52 = arith.constant dense<0.000000e+00> : vector<8x512xf32>
    %151 = tpu.matmul %148, %150, %cst_52 {dimension_numbers = #tpu.dot_dimension_numbers<[1], [0], [0], [1], [0, 0, 1, 1], [], []>} : vector<8x128xf32>, vector<128x512xf32>, vector<8x512xf32> -> vector<8x512xf32>
    %152 = arith.addf %149, %151 : vector<8x512xf32>
    %153 = vector.extract_strided_slice %152 {offsets = [0, 0], sizes = [8, 384], strides = [1, 1]} : vector<8x512xf32> to vector<8x384xf32>
    %154 = arith.negf %153 : vector<8x384xf32>
    %155 = math.exp %154 : vector<8x384xf32>
    %cst_53 = arith.constant 1.000000e+00 : f32
    %156 = vector.broadcast %cst_53 : f32 to vector<8x384xf32>
    %157 = arith.addf %156, %155 : vector<8x384xf32>
    %158 = arith.divf %156, %157 : vector<8x384xf32>
    %159 = vector.extract_strided_slice %158 {offsets = [0, 0], sizes = [8, 128], strides = [1, 1]} : vector<8x384xf32> to vector<8x128xf32>
    %160 = vector.extract_strided_slice %158 {offsets = [0, 128], sizes = [8, 128], strides = [1, 1]} : vector<8x384xf32> to vector<8x128xf32>
    %161 = vector.extract_strided_slice %158 {offsets = [0, 256], sizes = [8, 128], strides = [1, 1]} : vector<8x384xf32> to vector<8x128xf32>
    %162 = vector.extract_strided_slice %152 {offsets = [0, 384], sizes = [8, 128], strides = [1, 1]} : vector<8x512xf32> to vector<8x128xf32>
    %163 = math.tanh %162 : vector<8x128xf32>
    %164 = arith.mulf %160, %146 : vector<8x128xf32>
    %165 = arith.mulf %159, %163 : vector<8x128xf32>
    %166 = arith.addf %164, %165 : vector<8x128xf32>
    %167 = math.tanh %166 : vector<8x128xf32>
    %168 = arith.mulf %161, %167 : vector<8x128xf32>
    %c0_54 = arith.constant 0 : index
    %c0_55 = arith.constant 0 : index
    %169 = vector.load %arg6[%c0_54, %c0_55] : memref<128x64xf32, #tpu.memory_space<vmem>>, vector<128x64xf32>
    %cst_56 = arith.constant dense<0.000000e+00> : vector<8x64xf32>
    %170 = tpu.matmul %168, %169, %cst_56 {dimension_numbers = #tpu.dot_dimension_numbers<[1], [0], [0], [1], [0, 0, 1, 1], [], []>} : vector<8x128xf32>, vector<128x64xf32>, vector<8x64xf32> -> vector<8x64xf32>
    %171 = arith.addf %170, %14 : vector<8x64xf32>
    %cst_57 = arith.constant 0.000000e+00 : f32
    %172 = vector.broadcast %cst_57 : f32 to vector<8x64xf32>
    %173 = arith.maximumf %171, %172 : vector<8x64xf32>
    %c0_58 = arith.constant 0 : index
    %c0_59 = arith.constant 0 : index
    %174 = vector.load %arg9[%c0_58, %c0_59] : memref<64x64xf32, #tpu.memory_space<vmem>>, vector<64x64xf32>
    %cst_60 = arith.constant dense<0.000000e+00> : vector<8x64xf32>
    %175 = tpu.matmul %173, %174, %cst_60 {dimension_numbers = #tpu.dot_dimension_numbers<[1], [0], [0], [1], [0, 0, 1, 1], [], []>} : vector<8x64xf32>, vector<64x64xf32>, vector<8x64xf32> -> vector<8x64xf32>
    %c0_61 = arith.constant 0 : index
    %c0_62 = arith.constant 0 : index
    %176 = vector.load %arg10[%c0_61, %c0_62] : memref<1x64xf32, #tpu.memory_space<vmem>>, vector<1x64xf32>
    %177 = vector.broadcast %176 : vector<1x64xf32> to vector<8x64xf32>
    %178 = arith.addf %175, %177 : vector<8x64xf32>
    %cst_63 = arith.constant 0.000000e+00 : f32
    %179 = vector.broadcast %cst_63 : f32 to vector<8x64xf32>
    %180 = arith.maximumf %178, %179 : vector<8x64xf32>
    %c0_64 = arith.constant 0 : index
    %c0_65 = arith.constant 0 : index
    %181 = vector.load %arg11[%c0_64, %c0_65] : memref<64x128xf32, #tpu.memory_space<vmem>>, vector<64x128xf32>
    %cst_66 = arith.constant dense<0.000000e+00> : vector<8x128xf32>
    %182 = tpu.matmul %180, %181, %cst_66 {dimension_numbers = #tpu.dot_dimension_numbers<[1], [0], [0], [1], [0, 0, 1, 1], [], []>} : vector<8x64xf32>, vector<64x128xf32>, vector<8x128xf32> -> vector<8x128xf32>
    %c0_67 = arith.constant 0 : index
    %c0_68 = arith.constant 0 : index
    %183 = vector.load %arg12[%c0_67, %c0_68] : memref<1x128xf32, #tpu.memory_space<vmem>>, vector<1x128xf32>
    %184 = vector.broadcast %183 : vector<1x128xf32> to vector<8x128xf32>
    %185 = arith.addf %182, %184 : vector<8x128xf32>
    %c0_69 = arith.constant 0 : index
    %c0_70 = arith.constant 0 : index
    %c0_71 = arith.constant 0 : index
    %186 = vector.load %arg13[%c0_69, %c0_70, %c0_71] : memref<1x8x128xf32, #tpu.memory_space<vmem>>, vector<1x8x128xf32>
    %187 = vector.shape_cast %186 : vector<1x8x128xf32> to vector<8x128xf32>
    %188 = vector.shape_cast %185 : vector<8x128xf32> to vector<1x8x128xf32>
    tpu.vector_store %arg13[%c0_69, %c0_70, %c0_71], %188 {strides = array<i32>} : memref<1x8x128xf32, #tpu.memory_space<vmem>>, vector<1x8x128xf32>,
    return
  }
  func.func @transform_0(%arg0: i32) -> (i32, i32, i32) {
    %c0_i32 = arith.constant 0 : i32
    %c0_i32_0 = arith.constant 0 : i32
    %c0_i32_1 = arith.constant 0 : i32
    return %arg0, %c0_i32, %c0_i32_0 : i32, i32, i32
  }
  func.func @transform_1(%arg0: i32) -> (i32, i32, i32) {
    %c0_i32 = arith.constant 0 : i32
    %c0_i32_0 = arith.constant 0 : i32
    %c0_i32_1 = arith.constant 0 : i32
    return %arg0, %c0_i32, %c0_i32_0 : i32, i32, i32
  }
  func.func @transform_2(%arg0: i32) -> (i32, i32) {
    %c0_i32 = arith.constant 0 : i32
    %c0_i32_0 = arith.constant 0 : i32
    %c0_i32_1 = arith.constant 0 : i32
    return %c0_i32, %c0_i32_0 : i32, i32
  }
  func.func @transform_3(%arg0: i32) -> (i32, i32) {
    %c0_i32 = arith.constant 0 : i32
    %c0_i32_0 = arith.constant 0 : i32
    %c0_i32_1 = arith.constant 0 : i32
    return %c0_i32, %c0_i32_0 : i32, i32
  }
  func.func @transform_4(%arg0: i32) -> (i32, i32) {
    %c0_i32 = arith.constant 0 : i32
    %c0_i32_0 = arith.constant 0 : i32
    %c0_i32_1 = arith.constant 0 : i32
    return %c0_i32, %c0_i32_0 : i32, i32
  }
  func.func @transform_5(%arg0: i32) -> (i32, i32) {
    %c0_i32 = arith.constant 0 : i32
    %c0_i32_0 = arith.constant 0 : i32
    %c0_i32_1 = arith.constant 0 : i32
    return %c0_i32, %c0_i32_0 : i32, i32
  }
  func.func @transform_6(%arg0: i32) -> (i32, i32) {
    %c0_i32 = arith.constant 0 : i32
    %c0_i32_0 = arith.constant 0 : i32
    %c0_i32_1 = arith.constant 0 : i32
    return %c0_i32, %c0_i32_0 : i32, i32
  }
  func.func @transform_7(%arg0: i32) -> (i32, i32) {
    %c0_i32 = arith.constant 0 : i32
    %c0_i32_0 = arith.constant 0 : i32
    %c0_i32_1 = arith.constant 0 : i32
    return %c0_i32, %c0_i32_0 : i32, i32
  }
  func.func @transform_8(%arg0: i32) -> (i32, i32) {
    %c0_i32 = arith.constant 0 : i32
    %c0_i32_0 = arith.constant 0 : i32
    %c0_i32_1 = arith.constant 0 : i32
    return %c0_i32, %c0_i32_0 : i32, i32
  }
  func.func @transform_9(%arg0: i32) -> (i32, i32) {
    %c0_i32 = arith.constant 0 : i32
    %c0_i32_0 = arith.constant 0 : i32
    %c0_i32_1 = arith.constant 0 : i32
    return %c0_i32, %c0_i32_0 : i32, i32
  }
  func.func @transform_10(%arg0: i32) -> (i32, i32) {
    %c0_i32 = arith.constant 0 : i32
    %c0_i32_0 = arith.constant 0 : i32
    %c0_i32_1 = arith.constant 0 : i32
    return %c0_i32, %c0_i32_0 : i32, i32
  }
  func.func @transform_11(%arg0: i32) -> (i32, i32) {
    %c0_i32 = arith.constant 0 : i32
    %c0_i32_0 = arith.constant 0 : i32
    %c0_i32_1 = arith.constant 0 : i32
    return %c0_i32, %c0_i32_0 : i32, i32
  }
  func.func @transform_12(%arg0: i32) -> (i32, i32, i32) {
    %c0_i32 = arith.constant 0 : i32
    %c0_i32_0 = arith.constant 0 : i32
    %c0_i32_1 = arith.constant 0 : i32
    return %arg0, %c0_i32, %c0_i32_0 : i32, i32, i32
  }
}

</mosaic_0001>

<llo_original>
// kernel: tpu_custom_call.1
$region0: #{tpu_custom_call.1}
  #allocation0 [shape = 'u32[]', space=smem, size = 0x4, offset = 0x4, fixed_abs, tag = 'smem constant byte address 0x4 - core index']
  #allocation1 [shape = 'u32[144,128]{1,0:T(1,128)}', space=vmem, size = 0x12000, scoped, tag = 'internal scratch']
  #allocation2 [shape = 'f32[64,512]{1,0:T(8,128)}', space=vmem, size = 0x20000, scoped, tag = 'scratch operand']
  %s0 = inlined_call_operand.vmem [shape: f32[1,64,16], index: 0, kind: input, shape index: {}]
  %s1 = inlined_call_operand.vmem [shape: f32[1,8,128], index: 1, kind: input, shape index: {}]
  %s2 = inlined_call_operand.vmem [shape: f32[16,512], index: 2, kind: input, shape index: {}]
  %s3 = inlined_call_operand.hbm [shape: f32[128,512], index: 3, kind: input, shape index: {}]
  %s4 = inlined_call_operand.vmem [shape: f32[1,512], index: 4, kind: input, shape index: {}]
  %s5 = inlined_call_operand.vmem [shape: f32[128,64], index: 5, kind: input, shape index: {}]
  %s6 = inlined_call_operand.vmem [shape: f32[128,64], index: 6, kind: input, shape index: {}]
  %s7 = inlined_call_operand.vmem [shape: f32[1,64], index: 7, kind: input, shape index: {}]
  %s8 = inlined_call_operand.vmem [shape: f32[64,64], index: 8, kind: input, shape index: {}]
  %s9 = inlined_call_operand.vmem [shape: f32[1,64], index: 9, kind: input, shape index: {}]
  %s10 = inlined_call_operand.vmem [shape: f32[64,128], index: 10, kind: input, shape index: {}]
  %s11 = inlined_call_operand.vmem [shape: f32[1,128], index: 11, kind: input, shape index: {}]
  %s12 = inlined_call_operand.hbm [shape: f32[1,8,128], index: 12, kind: output, shape index: {}]
  %s13 = sld [smem:[#allocation0]]
  $region62: #{tpu_custom_call.1} parent=0
    _
  %s15 = ssub.s32 1, %s13
  %s16 = scalar_select 0, %s15, %s13
  $region1: #{tpu_custom_call.1} parent=0
    #allocation3 [shape = 'u8[262144]{0}', space=vmem, size = 0x40000, scoped, tag = 'input window, operand 3, single buffered']
    #allocation4 [shape = 's32[1]{0}', space=sflag, size = 0x4, scoped, tag = 'scoped memory for tpu_custom_call.1']
    #allocation5 [shape = 's32[1]{0}', space=sflag, size = 0x4, scoped, tag = 'scoped memory for tpu_custom_call.1']
    #allocation6 [shape = 'u8[4096]{0}', space=vmem, size = 0x1000, scoped, tag = 'output window, operand 0, single buffered']
    %17 = vsyncpa [#allocation4], 0
    %18 = vsyncpa [#allocation5], 0
    // Predicated region
    $region2: #{tpu_custom_call.1} parent=1 // pred_check
      _
    $region3: #{tpu_custom_call.1} parent=1 // pred_check_branch
      %20 = sbr.rel (0) target = $region5
    $region4: #{tpu_custom_call.1} parent=1 // pred_region
      _
    $region5: #{tpu_custom_call.1} parent=1 // pred_fallthru
      _
    // Predicated region
    $region6: #{tpu_custom_call.1} parent=1 // pred_check
      _
    $region7: #{tpu_custom_call.1} parent=1 // pred_check_branch
      %22 = sbr.rel (0) target = $region9
    $region8: #{tpu_custom_call.1} parent=1 // pred_region
      _
    $region9: #{tpu_custom_call.1} parent=1 // pred_fallthru
      _
    // Predicated region
    $region10: #{tpu_custom_call.1} parent=1 // pred_check
      _
    $region11: #{tpu_custom_call.1} parent=1 // pred_check_branch
      %24 = sbr.rel (0) target = $region13
    $region12: #{tpu_custom_call.1} parent=1 // pred_region
      _
    $region13: #{tpu_custom_call.1} parent=1 // pred_fallthru
      _
    // Predicated region
    $region14: #{tpu_custom_call.1} parent=1 // pred_check
      _
    $region15: #{tpu_custom_call.1} parent=1 // pred_check_branch
      %26 = sbr.rel (0) target = $region17
    $region16: #{tpu_custom_call.1} parent=1 // pred_region
      %s28 = ssub.s32 8192, 8192
      %29 = vsyncadd [#allocation4], %s28
      %s30 = sshll.u32 [#allocation3], 4
      %s31 = int_to_ptr.vmem [resolvable:$true] %s30
      %36 = dma.hbm_to_vmem [thread:$0]  %s3, 8192, %s31, [#allocation4], 512, 512, 32
    $region17: #{tpu_custom_call.1} parent=1 // pred_fallthru
      _
    // Predicated region
    $region18: #{tpu_custom_call.1} parent=1 // pred_check
      _
    $region19: #{tpu_custom_call.1} parent=1 // pred_check_branch
      %38 = sbr.rel (0) target = $region21
    $region20: #{tpu_custom_call.1} parent=1 // pred_region
      _
    $region21: #{tpu_custom_call.1} parent=1 // pred_fallthru
      _
    // Predicated region
    $region22: #{tpu_custom_call.1} parent=1 // pred_check
      _
    $region23: #{tpu_custom_call.1} parent=1 // pred_check_branch
      %40 = sbr.rel (0) target = $region25
    $region24: #{tpu_custom_call.1} parent=1 // pred_region
      _
    $region25: #{tpu_custom_call.1} parent=1 // pred_fallthru
      _
    // Predicated region
    $region26: #{tpu_custom_call.1} parent=1 // pred_check
      _
    $region27: #{tpu_custom_call.1} parent=1 // pred_check_branch
      %42 = sbr.rel (0) target = $region29
    $region28: #{tpu_custom_call.1} parent=1 // pred_region
      _
    $region29: #{tpu_custom_call.1} parent=1 // pred_fallthru
      _
    // Predicated region
    $region30: #{tpu_custom_call.1} parent=1 // pred_check
      _
    $region31: #{tpu_custom_call.1} parent=1 // pred_check_branch
      %44 = sbr.rel (0) target = $region33
    $region32: #{tpu_custom_call.1} parent=1 // pred_region
      _
    $region33: #{tpu_custom_call.1} parent=1 // pred_fallthru
      _
    // Predicated region
    $region34: #{tpu_custom_call.1} parent=1 // pred_check
      _
    $region35: #{tpu_custom_call.1} parent=1 // pred_check_branch
      %46 = sbr.rel (0) target = $region37
    $region36: #{tpu_custom_call.1} parent=1 // pred_region
      _
    $region37: #{tpu_custom_call.1} parent=1 // pred_fallthru
      _
    // Predicated region
    $region38: #{tpu_custom_call.1} parent=1 // pred_check
      _
    $region39: #{tpu_custom_call.1} parent=1 // pred_check_branch
      %48 = sbr.rel (0) target = $region41
    $region40: #{tpu_custom_call.1} parent=1 // pred_region
      _
    $region41: #{tpu_custom_call.1} parent=1 // pred_fallthru
      _
    // Predicated region
    $region42: #{tpu_custom_call.1} parent=1 // pred_check
      _
    $region43: #{tpu_custom_call.1} parent=1 // pred_check_branch
      %50 = sbr.rel (0) target = $region45
    $region44: #{tpu_custom_call.1} parent=1 // pred_region
      _
    $region45: #{tpu_custom_call.1} parent=1 // pred_fallthru
      _
    // Predicated region
    $region46: #{tpu_custom_call.1} parent=1 // pred_check
      _
    $region47: #{tpu_custom_call.1} parent=1 // pred_check_branch
      %52 = sbr.rel (0) target = $region49
    $region48: #{tpu_custom_call.1} parent=1 // pred_region
      _
    $region49: #{tpu_custom_call.1} parent=1 // pred_fallthru
      _
    // Predicated region
    $region50: #{tpu_custom_call.1} parent=1 // pred_check
      _
    $region51: #{tpu_custom_call.1} parent=1 // pred_check_branch
      %54 = sbr.rel (0) target = $region53
    $region52: #{tpu_custom_call.1} parent=1 // pred_region
      %55 = dma.done [#allocation4], 8192
    $region53: #{tpu_custom_call.1} parent=1 // pred_fallthru
      _
    %v56 = vld [vmem:[%s0] sm:$0xff]
    %v57 = vld [vmem:[%s0 + $0x8] sm:$0xff]
    %v58 = vld [vmem:[%s0 + $0x10] sm:$0xff]
    %v59 = vld [vmem:[%s0 + $0x18] sm:$0xff]
    %v60 = vld [vmem:[%s0 + $0x20] sm:$0xff]
    %v61 = vld [vmem:[%s0 + $0x28] sm:$0xff]
    %v62 = vld [vmem:[%s0 + $0x30] sm:$0xff]
    %v63 = vld [vmem:[%s0 + $0x38] sm:$0xff]
    %v64 = vld [vmem:[%s2] sm:$0xff]
    %v65 = vld [vmem:[%s2 + $0x8] sm:$0xff]
    %v66 = vld [vmem:[%s2 + $0x10] sm:$0xff]
    %v67 = vld [vmem:[%s2 + $0x18] sm:$0xff]
    %v68 = vld [vmem:[%s2 + $0x20] sm:$0xff]
    %v69 = vld [vmem:[%s2 + $0x28] sm:$0xff]
    %v70 = vld [vmem:[%s2 + $0x30] sm:$0xff]
    %v71 = vld [vmem:[%s2 + $0x38] sm:$0xff]
    %v72 = vld [vmem:[%s4] sm:$0xf]
    %v74 = vlaneseq
    %v75 = vshrl.u32 %v74, 7
    %v76 = vsub.s32 0, %v75
    %v77 = vrot.slane %v72, %v76
    %v78 = vlaneseq
    %v79 = vshrl.u32 %v78, 7
    %v80 = vsub.s32 1, %v79
    %v81 = vrot.slane %v72, %v80
    %v82 = vlaneseq
    %v83 = vshrl.u32 %v82, 7
    %v84 = vsub.s32 2, %v83
    %v85 = vrot.slane %v72, %v84
    %v86 = vlaneseq
    %v87 = vshrl.u32 %v86, 7
    %v88 = vsub.s32 3, %v87
    %v89 = vrot.slane %v72, %v88
    %vm94 = vcmask 130048
    %v96 = vsel %vm94, %v56, 0
    %v99 = vsel %vm94, %v57, 0
    %v102 = vsel %vm94, %v58, 0
    %v105 = vsel %vm94, %v59, 0
    %v108 = vsel %vm94, %v60, 0
    %v111 = vsel %vm94, %v61, 0
    %v114 = vsel %vm94, %v62, 0
    %v117 = vsel %vm94, %v63, 0
    %119 = vmatprep.subr.mxu0 %v65
    %120 = vmatpush1.msra.mxu0 %v64
    %121 = vmatprep.subr.mxu0 %v69
    %122 = vmatpush1.msra.mxu0 %v68
    %123 = vmatprep.subr.mxu0 0.0
    %124 = vmatpush1.msra.mxu0 0.0
    %125 = vmatprep.subr.mxu0 0.0
    %126 = vmatpush1.msra.mxu0 0.0
    %127 = vmatprep.subr.mxu0 0.0
    %128 = vmatpush1.msra.mxu0 0.0
    %129 = vmatprep.subr.mxu0 0.0
    %130 = vmatpush1.msra.mxu0 0.0
    %131 = vmatprep.subr.mxu0 0.0
    %132 = vmatpush1.msra.mxu0 0.0
    %133 = vmatprep.subr.mxu0 0.0
    %134 = vmatpush1.msra.mxu0 0.0
    %135 = vmatprep.subr.mxu0 0.0
    %136 = vmatpush1.msra.mxu0 0.0
    %137 = vmatprep.subr.mxu0 0.0
    %138 = vmatpush1.msra.mxu0 0.0
    %139 = vmatprep.subr.mxu0 0.0
    %140 = vmatpush1.msra.mxu0 0.0
    %141 = vmatprep.subr.mxu0 0.0
    %142 = vmatpush1.msra.mxu0 0.0
    %143 = vmatprep.subr.mxu0 0.0
    %144 = vmatpush1.msra.mxu0 0.0
    %145 = vmatprep.subr.mxu0 0.0
    %146 = vmatpush1.msra.mxu0 0.0
    %147 = vmatprep.subr.mxu0 0.0
    %148 = vmatpush1.msra.mxu0 0.0
    %149 = vmatprep.subr.mxu0 0.0
    %150 = vmatpush1.msra.mxu0 0.0
    %151 = vmatprep.subr.mxu0 0.0
    %152 = vmatpush1.msra.mxu0 0.0
    %153 = vmatprep.subr.mxu0 0.0
    %154 = vmatpush1.msra.mxu0 0.0
    %155 = vmatprep.subr.mxu0 0.0
    %156 = vmatpush1.msra.mxu0 0.0
    %157 = vmatprep.subr.mxu0 0.0
    %158 = vmatpush1.msra.mxu0 0.0
    %159 = vmatprep.subr.mxu0 0.0
    %160 = vmatpush1.msra.mxu0 0.0
    %161 = vmatprep.subr.mxu0 0.0
    %162 = vmatpush1.msra.mxu0 0.0
    %163 = vmatprep.subr.mxu0 0.0
    %164 = vmatpush1.msra.mxu0 0.0
    %165 = vmatprep.subr.mxu0 0.0
    %166 = vmatpush1.msra.mxu0 0.0
    %167 = vmatprep.subr.mxu0 0.0
    %168 = vmatpush1.msra.mxu0 0.0
    %169 = vmatprep.subr.mxu0 0.0
    %170 = vmatpush1.msra.mxu0 0.0
    %171 = vmatprep.subr.mxu0 0.0
    %172 = vmatpush1.msra.mxu0 0.0
    %173 = vmatprep.subr.mxu0 0.0
    %174 = vmatpush1.msra.mxu0 0.0
    %175 = vmatprep.subr.mxu0 0.0
    %176 = vmatpush1.msra.mxu0 0.0
    %177 = vmatprep.subr.mxu0 0.0
    %178 = vmatpush1.msra.mxu0 0.0
    %179 = vmatprep.subr.mxu0 0.0
    %180 = vmatpush1.msra.mxu0 0.0
    %181 = vmatprep.subr.mxu0 0.0
    %182 = vmatpush1.msra.mxu0 0.0
    %183 = vmatprep.mubr.f32.mxu0 0.0
    %184 = vmatmul.mubr.f32.gmra.mrb[0].mxu0 %v96
    %v185 = vpop.f32.mrb[0].mxu0
    %v186 = vadd.f32 %v77, %v185
    %v187 = vpop.f32.mrb[0].mxu0
    %v188 = vadd.f32 %v81, %v187
    %189 = vmatprep.mubr.f32.mxu0 0.0
    %190 = vmatmul.mubr.f32.gmra.mrb[0].mxu0 %v99
    %v191 = vpop.f32.mrb[0].mxu0
    %v192 = vadd.f32 %v77, %v191
    %v193 = vpop.f32.mrb[0].mxu0
    %v194 = vadd.f32 %v81, %v193
    %195 = vmatprep.mubr.f32.mxu0 0.0
    %196 = vmatmul.mubr.f32.gmra.mrb[0].mxu0 %v102
    %v197 = vpop.f32.mrb[0].mxu0
    %v198 = vadd.f32 %v77, %v197
    %v199 = vpop.f32.mrb[0].mxu0
    %v200 = vadd.f32 %v81, %v199
    %201 = vmatprep.mubr.f32.mxu0 0.0
    %202 = vmatmul.mubr.f32.gmra.mrb[0].mxu0 %v105
    %v203 = vpop.f32.mrb[0].mxu0
    %v204 = vadd.f32 %v77, %v203
    %v205 = vpop.f32.mrb[0].mxu0
    %v206 = vadd.f32 %v81, %v205
    %207 = vmatprep.mubr.f32.mxu0 0.0
    %208 = vmatmul.mubr.f32.gmra.mrb[0].mxu0 %v108
    %v209 = vpop.f32.mrb[0].mxu0
    %v210 = vadd.f32 %v77, %v209
    %v211 = vpop.f32.mrb[0].mxu0
    %v212 = vadd.f32 %v81, %v211
    %213 = vmatprep.mubr.f32.mxu0 0.0
    %214 = vmatmul.mubr.f32.gmra.mrb[0].mxu0 %v111
    %v215 = vpop.f32.mrb[0].mxu0
    %v216 = vadd.f32 %v77, %v215
    %v217 = vpop.f32.mrb[0].mxu0
    %v218 = vadd.f32 %v81, %v217
    %219 = vmatprep.mubr.f32.mxu0 0.0
    %220 = vmatmul.mubr.f32.gmra.mrb[0].mxu0 %v114
    %v221 = vpop.f32.mrb[0].mxu0
    %v222 = vadd.f32 %v77, %v221
    %v223 = vpop.f32.mrb[0].mxu0
    %v224 = vadd.f32 %v81, %v223
    %225 = vmatprep.mubr.f32.mxu0 0.0
    %226 = vmatmul.mubr.f32.gmra.mrb[0].mxu0 %v117
    %v227 = vpop.f32.mrb[0].mxu0
    %v228 = vadd.f32 %v77, %v227
    %v229 = vpop.f32.mrb[0].mxu0
    %v230 = vadd.f32 %v81, %v229
    %231 = vdwg.mxu0
    %232 = vmatprep.subr.mxu0 %v67
    %233 = vmatpush1.msra.mxu0 %v66
    %234 = vmatprep.subr.mxu0 %v71
    %235 = vmatpush1.msra.mxu0 %v70
    %236 = vmatprep.subr.mxu0 0.0
    %237 = vmatpush1.msra.mxu0 0.0
    %238 = vmatprep.subr.mxu0 0.0
    %239 = vmatpush1.msra.mxu0 0.0
    %240 = vmatprep.subr.mxu0 0.0
    %241 = vmatpush1.msra.mxu0 0.0
    %242 = vmatprep.subr.mxu0 0.0
    %243 = vmatpush1.msra.mxu0 0.0
    %244 = vmatprep.subr.mxu0 0.0
    %245 = vmatpush1.msra.mxu0 0.0
    %246 = vmatprep.subr.mxu0 0.0
    %247 = vmatpush1.msra.mxu0 0.0
    %248 = vmatprep.subr.mxu0 0.0
    %249 = vmatpush1.msra.mxu0 0.0
    %250 = vmatprep.subr.mxu0 0.0
    %251 = vmatpush1.msra.mxu0 0.0
    %252 = vmatprep.subr.mxu0 0.0
    %253 = vmatpush1.msra.mxu0 0.0
    %254 = vmatprep.subr.mxu0 0.0
    %255 = vmatpush1.msra.mxu0 0.0
    %256 = vmatprep.subr.mxu0 0.0
    %257 = vmatpush1.msra.mxu0 0.0
    %258 = vmatprep.subr.mxu0 0.0
    %259 = vmatpush1.msra.mxu0 0.0
    %260 = vmatprep.subr.mxu0 0.0
    %261 = vmatpush1.msra.mxu0 0.0
    %262 = vmatprep.subr.mxu0 0.0
    %263 = vmatpush1.msra.mxu0 0.0
    %264 = vmatprep.subr.mxu0 0.0
    %265 = vmatpush1.msra.mxu0 0.0
    %266 = vmatprep.subr.mxu0 0.0
    %267 = vmatpush1.msra.mxu0 0.0
    %268 = vmatprep.subr.mxu0 0.0
    %269 = vmatpush1.msra.mxu0 0.0
    %270 = vmatprep.subr.mxu0 0.0
    %271 = vmatpush1.msra.mxu0 0.0
    %272 = vmatprep.subr.mxu0 0.0
    %273 = vmatpush1.msra.mxu0 0.0
    %274 = vmatprep.subr.mxu0 0.0
    %275 = vmatpush1.msra.mxu0 0.0
    %276 = vmatprep.subr.mxu0 0.0
    %277 = vmatpush1.msra.mxu0 0.0
    %278 = vmatprep.subr.mxu0 0.0
    %279 = vmatpush1.msra.mxu0 0.0
    %280 = vmatprep.subr.mxu0 0.0
    %281 = vmatpush1.msra.mxu0 0.0
    %282 = vmatprep.subr.mxu0 0.0
    %283 = vmatpush1.msra.mxu0 0.0
    %284 = vmatprep.subr.mxu0 0.0
    %285 = vmatpush1.msra.mxu0 0.0
    %286 = vmatprep.subr.mxu0 0.0
    %287 = vmatpush1.msra.mxu0 0.0
    %288 = vmatprep.subr.mxu0 0.0
    %289 = vmatpush1.msra.mxu0 0.0
    %290 = vmatprep.subr.mxu0 0.0
    %291 = vmatpush1.msra.mxu0 0.0
    %292 = vmatprep.subr.mxu0 0.0
    %293 = vmatpush1.msra.mxu0 0.0
    %294 = vmatprep.subr.mxu0 0.0
    %295 = vmatpush1.msra.mxu0 0.0
    %296 = vmatprep.mubr.f32.mxu0 0.0
    %297 = vmatmul.mubr.f32.gmra.mrb[0].mxu0 %v96
    %v298 = vpop.f32.mrb[0].mxu0
    %v299 = vadd.f32 %v85, %v298
    %v300 = vpop.f32.mrb[0].mxu0
    %v301 = vadd.f32 %v89, %v300
    %302 = vmatprep.mubr.f32.mxu0 0.0
    %303 = vmatmul.mubr.f32.gmra.mrb[0].mxu0 %v99
    %v304 = vpop.f32.mrb[0].mxu0
    %v305 = vadd.f32 %v85, %v304
    %v306 = vpop.f32.mrb[0].mxu0
    %v307 = vadd.f32 %v89, %v306
    %308 = vmatprep.mubr.f32.mxu0 0.0
    %309 = vmatmul.mubr.f32.gmra.mrb[0].mxu0 %v102
    %v310 = vpop.f32.mrb[0].mxu0
    %v311 = vadd.f32 %v85, %v310
    %v312 = vpop.f32.mrb[0].mxu0
    %v313 = vadd.f32 %v89, %v312
    %314 = vmatprep.mubr.f32.mxu0 0.0
    %315 = vmatmul.mubr.f32.gmra.mrb[0].mxu0 %v105
    %v316 = vpop.f32.mrb[0].mxu0
    %v317 = vadd.f32 %v85, %v316
    %v318 = vpop.f32.mrb[0].mxu0
    %v319 = vadd.f32 %v89, %v318
    %320 = vmatprep.mubr.f32.mxu0 0.0
    %321 = vmatmul.mubr.f32.gmra.mrb[0].mxu0 %v108
    %v322 = vpop.f32.mrb[0].mxu0
    %v323 = vadd.f32 %v85, %v322
    %v324 = vpop.f32.mrb[0].mxu0
    %v325 = vadd.f32 %v89, %v324
    %326 = vmatprep.mubr.f32.mxu0 0.0
    %327 = vmatmul.mubr.f32.gmra.mrb[0].mxu0 %v111
    %v328 = vpop.f32.mrb[0].mxu0
    %v329 = vadd.f32 %v85, %v328
    %v330 = vpop.f32.mrb[0].mxu0
    %v331 = vadd.f32 %v89, %v330
    %332 = vmatprep.mubr.f32.mxu0 0.0
    %333 = vmatmul.mubr.f32.gmra.mrb[0].mxu0 %v114
    %v334 = vpop.f32.mrb[0].mxu0
    %v335 = vadd.f32 %v85, %v334
    %v336 = vpop.f32.mrb[0].mxu0
    %v337 = vadd.f32 %v89, %v336
    %338 = vmatprep.mubr.f32.mxu0 0.0
    %339 = vmatmul.mubr.f32.gmra.mrb[0].mxu0 %v117
    %v340 = vpop.f32.mrb[0].mxu0
    %v341 = vadd.f32 %v85, %v340
    %v342 = vpop.f32.mrb[0].mxu0
    %v343 = vadd.f32 %v89, %v342
    %344 = vdwg.mxu0
    %345 = vst [vmem:[#allocation2] sm:$0xff] %v186
    %346 = vst [vmem:[#allocation2 + $0x8] sm:$0xff] %v188
    %347 = vst [vmem:[#allocation2 + $0x10] sm:$0xff] %v299
    %348 = vst [vmem:[#allocation2 + $0x18] sm:$0xff] %v301
    %349 = vst [vmem:[#allocation2 + $0x20] sm:$0xff] %v192
    %350 = vst [vmem:[#allocation2 + $0x28] sm:$0xff] %v194
    %351 = vst [vmem:[#allocation2 + $0x30] sm:$0xff] %v305
    %352 = vst [vmem:[#allocation2 + $0x38] sm:$0xff] %v307
    %353 = vst [vmem:[#allocation2 + $0x40] sm:$0xff] %v198
    %354 = vst [vmem:[#allocation2 + $0x48] sm:$0xff] %v200
    %355 = vst [vmem:[#allocation2 + $0x50] sm:$0xff] %v311
    %356 = vst [vmem:[#allocation2 + $0x58] sm:$0xff] %v313
    %357 = vst [vmem:[#allocation2 + $0x60] sm:$0xff] %v204
    %358 = vst [vmem:[#allocation2 + $0x68] sm:$0xff] %v206
    %359 = vst [vmem:[#allocation2 + $0x70] sm:$0xff] %v317
    %360 = vst [vmem:[#allocation2 + $0x78] sm:$0xff] %v319
    %361 = vst [vmem:[#allocation2 + $0x80] sm:$0xff] %v210
    %362 = vst [vmem:[#allocation2 + $0x88] sm:$0xff] %v212
    %363 = vst [vmem:[#allocation2 + $0x90] sm:$0xff] %v323
    %364 = vst [vmem:[#allocation2 + $0x98] sm:$0xff] %v325
    %365 = vst [vmem:[#allocation2 + $0xa0] sm:$0xff] %v216
    %366 = vst [vmem:[#allocation2 + $0xa8] sm:$0xff] %v218
    %367 = vst [vmem:[#allocation2 + $0xb0] sm:$0xff] %v329
    %368 = vst [vmem:[#allocation2 + $0xb8] sm:$0xff] %v331
    %369 = vst [vmem:[#allocation2 + $0xc0] sm:$0xff] %v222
    %370 = vst [vmem:[#allocation2 + $0xc8] sm:$0xff] %v224
    %371 = vst [vmem:[#allocation2 + $0xd0] sm:$0xff] %v335
    %372 = vst [vmem:[#allocation2 + $0xd8] sm:$0xff] %v337
    %373 = vst [vmem:[#allocation2 + $0xe0] sm:$0xff] %v228
    %374 = vst [vmem:[#allocation2 + $0xe8] sm:$0xff] %v230
    %375 = vst [vmem:[#allocation2 + $0xf0] sm:$0xff] %v341
    %376 = vst [vmem:[#allocation2 + $0xf8] sm:$0xff] %v343
    %v377 = vld [vmem:[%s1] sm:$0xff]
    %v378 = vld [vmem:[%s6] sm:$0xff]
    %v379 = vld [vmem:[%s6 + $0x8] sm:$0xff]
    %v380 = vld [vmem:[%s6 + $0x10] sm:$0xff]
    %v381 = vld [vmem:[%s6 + $0x18] sm:$0xff]
    %v382 = vld [vmem:[%s6 + $0x20] sm:$0xff]
    %v383 = vld [vmem:[%s6 + $0x28] sm:$0xff]
    %v384 = vld [vmem:[%s6 + $0x30] sm:$0xff]
    %v385 = vld [vmem:[%s6 + $0x38] sm:$0xff]
    %v386 = vld [vmem:[%s6 + $0x40] sm:$0xff]
    %v387 = vld [vmem:[%s6 + $0x48] sm:$0xff]
    %v388 = vld [vmem:[%s6 + $0x50] sm:$0xff]
    %v389 = vld [vmem:[%s6 + $0x58] sm:$0xff]
    %v390 = vld [vmem:[%s6 + $0x60] sm:$0xff]
    %v391 = vld [vmem:[%s6 + $0x68] sm:$0xff]
    %v392 = vld [vmem:[%s6 + $0x70] sm:$0xff]
    %v393 = vld [vmem:[%s6 + $0x78] sm:$0xff]
    %v394 = vld [vmem:[%s7] sm:$0x1]
    %v396 = vlaneseq
    %v397 = vshrl.u32 %v396, 7
    %v398 = vsub.s32 0, %v397
    %v399 = vrot.slane %v394, %v398
    %401 = vmatprep.subr.mxu0 0.0
    %402 = vmatpush1.msra.mxu0 %v378
    %403 = vmatprep.subr.mxu0 0.0
    %404 = vmatpush1.msra.mxu0 %v379
    %405 = vmatprep.subr.mxu0 0.0
    %406 = vmatpush1.msra.mxu0 %v380
    %407 = vmatprep.subr.mxu0 0.0
    %408 = vmatpush1.msra.mxu0 %v381
    %409 = vmatprep.subr.mxu0 0.0
    %410 = vmatpush1.msra.mxu0 %v382
    %411 = vmatprep.subr.mxu0 0.0
    %412 = vmatpush1.msra.mxu0 %v383
    %413 = vmatprep.subr.mxu0 0.0
    %414 = vmatpush1.msra.mxu0 %v384
    %415 = vmatprep.subr.mxu0 0.0
    %416 = vmatpush1.msra.mxu0 %v385
    %417 = vmatprep.subr.mxu0 0.0
    %418 = vmatpush1.msra.mxu0 %v386
    %419 = vmatprep.subr.mxu0 0.0
    %420 = vmatpush1.msra.mxu0 %v387
    %421 = vmatprep.subr.mxu0 0.0
    %422 = vmatpush1.msra.mxu0 %v388
    %423 = vmatprep.subr.mxu0 0.0
    %424 = vmatpush1.msra.mxu0 %v389
    %425 = vmatprep.subr.mxu0 0.0
    %426 = vmatpush1.msra.mxu0 %v390
    %427 = vmatprep.subr.mxu0 0.0
    %428 = vmatpush1.msra.mxu0 %v391
    %429 = vmatprep.subr.mxu0 0.0
    %430 = vmatpush1.msra.mxu0 %v392
    %431 = vmatprep.subr.mxu0 0.0
    %432 = vmatpush1.msra.mxu0 %v393
    %433 = vmatprep.subr.mxu0 0.0
    %434 = vmatpush1.msra.mxu0 0.0
    %435 = vmatprep.subr.mxu0 0.0
    %436 = vmatpush1.msra.mxu0 0.0
    %437 = vmatprep.subr.mxu0 0.0
    %438 = vmatpush1.msra.mxu0 0.0
    %439 = vmatprep.subr.mxu0 0.0
    %440 = vmatpush1.msra.mxu0 0.0
    %441 = vmatprep.subr.mxu0 0.0
    %442 = vmatpush1.msra.mxu0 0.0
    %443 = vmatprep.subr.mxu0 0.0
    %444 = vmatpush1.msra.mxu0 0.0
    %445 = vmatprep.subr.mxu0 0.0
    %446 = vmatpush1.msra.mxu0 0.0
    %447 = vmatprep.subr.mxu0 0.0
    %448 = vmatpush1.msra.mxu0 0.0
    %449 = vmatprep.subr.mxu0 0.0
    %450 = vmatpush1.msra.mxu0 0.0
    %451 = vmatprep.subr.mxu0 0.0
    %452 = vmatpush1.msra.mxu0 0.0
    %453 = vmatprep.subr.mxu0 0.0
    %454 = vmatpush1.msra.mxu0 0.0
    %455 = vmatprep.subr.mxu0 0.0
    %456 = vmatpush1.msra.mxu0 0.0
    %457 = vmatprep.subr.mxu0 0.0
    %458 = vmatpush1.msra.mxu0 0.0
    %459 = vmatprep.subr.mxu0 0.0
    %460 = vmatpush1.msra.mxu0 0.0
    %461 = vmatprep.subr.mxu0 0.0
    %462 = vmatpush1.msra.mxu0 0.0
    %463 = vmatprep.subr.mxu0 0.0
    %464 = vmatpush1.msra.mxu0 0.0
    %465 = vmatprep.mubr.f32.mxu0 0.0
    %466 = vmatmul.mubr.f32.gmra.mrb[0].mxu0 %v377
    %v467 = vpop.f32.mrb[0].mxu0
    %v468 = vadd.f32 %v399, %v467
    %v469 = vpop.f32.mrb[0].mxu0
    %470 = vdwg.mxu0
    %v471 = vld [vmem:[#allocation2] sm:$0xff]
    %v472 = vld [vmem:[#allocation2 + $0x10] sm:$0xff]
    %v473 = vld [vmem:[#allocation2 + $0x18] sm:$0xff]
    %v474 = vxor.u32 %v471, 2147483648
    %v475 = vxor.u32 %v472, 2147483648
    %v476 = vmul.f32 %v474, 1.442695
    %v477 = vpow.pop %v476
    %v478 = vmul.f32 %v475, 1.442695
    %v479 = vpow.pop %v478
    %v480 = vadd.f32 %v477, 1.0
    %v481 = vadd.f32 %v479, 1.0
    %v482 = vrcp.pop %v480
    %v483 = vmul.f32 1.0, %v482
    %v484 = vrcp.pop %v481
    %v485 = vmul.f32 1.0, %v484
    %v486 = vtanh.pop %v473
    %v487 = vmul.f32 %v483, %v486
    %v488 = vtanh.pop %v487
    %v489 = vmul.f32 %v485, %v488
    %v490 = vld [vmem:[#allocation2 + $0x20] sm:$0xff]
    %v491 = vld [vmem:[#allocation2 + $0x28] sm:$0xff]
    %v492 = vld [vmem:[#allocation2 + $0x30] sm:$0xff]
    %v493 = vld [vmem:[#allocation2 + $0x38] sm:$0xff]
    %v494 = vld [vmem:[#allocation3] sm:$0xff]
    %v495 = vld [vmem:[#allocation3 + $0x8] sm:$0xff]
    %v496 = vld [vmem:[#allocation3 + $0x10] sm:$0xff]
    %v497 = vld [vmem:[#allocation3 + $0x18] sm:$0xff]
    %v498 = vld [vmem:[#allocation3 + $0x20] sm:$0xff]
    %v499 = vld [vmem:[#allocation3 + $0x28] sm:$0xff]
    %v500 = vld [vmem:[#allocation3 + $0x30] sm:$0xff]
    %v501 = vld [vmem:[#allocation3 + $0x38] sm:$0xff]
    %v502 = vld [vmem:[#allocation3 + $0x40] sm:$0xff]
    %v503 = vld [vmem:[#allocation3 + $0x48] sm:$0xff]
    %v504 = vld [vmem:[#allocation3 + $0x50] sm:$0xff]
    %v505 = vld [vmem:[#allocation3 + $0x58] sm:$0xff]
    %v506 = vld [vmem:[#allocation3 + $0x60] sm:$0xff]
    %v507 = vld [vmem:[#allocation3 + $0x68] sm:$0xff]
    %v508 = vld [vmem:[#allocation3 + $0x70] sm:$0xff]
    %v509 = vld [vmem:[#allocation3 + $0x78] sm:$0xff]
    %v510 = vld [vmem:[#allocation3 + $0x80] sm:$0xff]
    %v511 = vld [vmem:[#allocation3 + $0x88] sm:$0xff]
    %v512 = vld [vmem:[#allocation3 + $0x90] sm:$0xff]
    %v513 = vld [vmem:[#allocation3 + $0x98] sm:$0xff]
    %v514 = vld [vmem:[#allocation3 + $0xa0] sm:$0xff]
    %v515 = vld [vmem:[#allocation3 + $0xa8] sm:$0xff]
    %v516 = vld [vmem:[#allocation3 + $0xb0] sm:$0xff]
    %v517 = vld [vmem:[#allocation3 + $0xb8] sm:$0xff]
    %v518 = vld [vmem:[#allocation3 + $0xc0] sm:$0xff]
    %v519 = vld [vmem:[#allocation3 + $0xc8] sm:$0xff]
    %v520 = vld [vmem:[#allocation3 + $0xd0] sm:$0xff]
    %v521 = vld [vmem:[#allocation3 + $0xd8] sm:$0xff]
    %v522 = vld [vmem:[#allocation3 + $0xe0] sm:$0xff]
    %v523 = vld [vmem:[#allocation3 + $0xe8] sm:$0xff]
    %v524 = vld [vmem:[#allocation3 + $0xf0] sm:$0xff]
    %v525 = vld [vmem:[#allocation3 + $0xf8] sm:$0xff]
    %v526 = vld [vmem:[#allocation3 + $0x100] sm:$0xff]
    %v527 = vld [vmem:[#allocation3 + $0x108] sm:$0xff]
    %v528 = vld [vmem:[#allocation3 + $0x110] sm:$0xff]
    %v529 = vld [vmem:[#allocation3 + $0x118] sm:$0xff]
    %v530 = vld [vmem:[#allocation3 + $0x120] sm:$0xff]
    %v531 = vld [vmem:[#allocation3 + $0x128] sm:$0xff]
    %v532 = vld [vmem:[#allocation3 + $0x130] sm:$0xff]
    %v533 = vld [vmem:[#allocation3 + $0x138] sm:$0xff]
    %v534 = vld [vmem:[#allocation3 + $0x140] sm:$0xff]
    %v535 = vld [vmem:[#allocation3 + $0x148] sm:$0xff]
    %v536 = vld [vmem:[#allocation3 + $0x150] sm:$0xff]
    %v537 = vld [vmem:[#allocation3 + $0x158] sm:$0xff]
    %v538 = vld [vmem:[#allocation3 + $0x160] sm:$0xff]
    %v539 = vld [vmem:[#allocation3 + $0x168] sm:$0xff]
    %v540 = vld [vmem:[#allocation3 + $0x170] sm:$0xff]
    %v541 = vld [vmem:[#allocation3 + $0x178] sm:$0xff]
    %v542 = vld [vmem:[#allocation3 + $0x180] sm:$0xff]
    %v543 = vld [vmem:[#allocation3 + $0x188] sm:$0xff]
    %v544 = vld [vmem:[#allocation3 + $0x190] sm:$0xff]
    %v545 = vld [vmem:[#allocation3 + $0x198] sm:$0xff]
    %v546 = vld [vmem:[#allocation3 + $0x1a0] sm:$0xff]
    %v547 = vld [vmem:[#allocation3 + $0x1a8] sm:$0xff]
    %v548 = vld [vmem:[#allocation3 + $0x1b0] sm:$0xff]
    %v549 = vld [vmem:[#allocation3 + $0x1b8] sm:$0xff]
    %v550 = vld [vmem:[#allocation3 + $0x1c0] sm:$0xff]
    %v551 = vld [vmem:[#allocation3 + $0x1c8] sm:$0xff]
    %v552 = vld [vmem:[#allocation3 + $0x1d0] sm:$0xff]
    %v553 = vld [vmem:[#allocation3 + $0x1d8] sm:$0xff]
    %v554 = vld [vmem:[#allocation3 + $0x1e0] sm:$0xff]
    %v555 = vld [vmem:[#allocation3 + $0x1e8] sm:$0xff]
    %v556 = vld [vmem:[#allocation3 + $0x1f0] sm:$0xff]
    %v557 = vld [vmem:[#allocation3 + $0x1f8] sm:$0xff]
    %558 = vmatprep.subr.mxu0 %v495
    %559 = vmatpush1.msra.mxu0 %v494
    %560 = vmatprep.subr.mxu0 %v499
    %561 = vmatpush1.msra.mxu0 %v498
    %562 = vmatprep.subr.mxu0 %v503
    %563 = vmatpush1.msra.mxu0 %v502
    %564 = vmatprep.subr.mxu0 %v507
    %565 = vmatpush1.msra.mxu0 %v506
    %566 = vmatprep.subr.mxu0 %v511
    %567 = vmatpush1.msra.mxu0 %v510
    %568 = vmatprep.subr.mxu0 %v515
    %569 = vmatpush1.msra.mxu0 %v514
    %570 = vmatprep.subr.mxu0 %v519
    %571 = vmatpush1.msra.mxu0 %v518
    %572 = vmatprep.subr.mxu0 %v523
    %573 = vmatpush1.msra.mxu0 %v522
    %574 = vmatprep.subr.mxu0 %v527
    %575 = vmatpush1.msra.mxu0 %v526
    %576 = vmatprep.subr.mxu0 %v531
    %577 = vmatpush1.msra.mxu0 %v530
    %578 = vmatprep.subr.mxu0 %v535
    %579 = vmatpush1.msra.mxu0 %v534
    %580 = vmatprep.subr.mxu0 %v539
    %581 = vmatpush1.msra.mxu0 %v538
    %582 = vmatprep.subr.mxu0 %v543
    %583 = vmatpush1.msra.mxu0 %v542
    %584 = vmatprep.subr.mxu0 %v547
    %585 = vmatpush1.msra.mxu0 %v546
    %586 = vmatprep.subr.mxu0 %v551
    %587 = vmatpush1.msra.mxu0 %v550
    %588 = vmatprep.subr.mxu0 %v555
    %589 = vmatpush1.msra.mxu0 %v554
    %590 = vmatprep.subr.mxu0 0.0
    %591 = vmatpush1.msra.mxu0 0.0
    %592 = vmatprep.subr.mxu0 0.0
    %593 = vmatpush1.msra.mxu0 0.0
    %594 = vmatprep.subr.mxu0 0.0
    %595 = vmatpush1.msra.mxu0 0.0
    %596 = vmatprep.subr.mxu0 0.0
    %597 = vmatpush1.msra.mxu0 0.0
    %598 = vmatprep.subr.mxu0 0.0
    %599 = vmatpush1.msra.mxu0 0.0
    %600 = vmatprep.subr.mxu0 0.0
    %601 = vmatpush1.msra.mxu0 0.0
    %602 = vmatprep.subr.mxu0 0.0
    %603 = vmatpush1.msra.mxu0 0.0
    %604 = vmatprep.subr.mxu0 0.0
    %605 = vmatpush1.msra.mxu0 0.0
    %606 = vmatprep.subr.mxu0 0.0
    %607 = vmatpush1.msra.mxu0 0.0
    %608 = vmatprep.subr.mxu0 0.0
    %609 = vmatpush1.msra.mxu0 0.0
    %610 = vmatprep.subr.mxu0 0.0
    %611 = vmatpush1.msra.mxu0 0.0
    %612 = vmatprep.subr.mxu0 0.0
    %613 = vmatpush1.msra.mxu0 0.0
    %614 = vmatprep.subr.mxu0 0.0
    %615 = vmatpush1.msra.mxu0 0.0
    %616 = vmatprep.subr.mxu0 0.0
    %617 = vmatpush1.msra.mxu0 0.0
    %618 = vmatprep.subr.mxu0 0.0
    %619 = vmatpush1.msra.mxu0 0.0
    %620 = vmatprep.subr.mxu0 0.0
    %621 = vmatpush1.msra.mxu0 0.0
    %622 = vmatprep.mubr.f32.mxu0 0.0
    %623 = vmatmul.mubr.f32.gmra.mrb[0].mxu0 %v489
    %v624 = vpop.f32.mrb[0].mxu0
    %v625 = vadd.f32 0.0, %v624
    %v626 = vpop.f32.mrb[0].mxu0
    %v627 = vadd.f32 0.0, %v626
    %628 = vdwg.mxu0
    %629 = vmatprep.subr.mxu0 %v497
    %630 = vmatpush1.msra.mxu0 %v496
    %631 = vmatprep.subr.mxu0 %v501
    %632 = vmatpush1.msra.mxu0 %v500
    %633 = vmatprep.subr.mxu0 %v505
    %634 = vmatpush1.msra.mxu0 %v504
    %635 = vmatprep.subr.mxu0 %v509
    %636 = vmatpush1.msra.mxu0 %v508
    %637 = vmatprep.subr.mxu0 %v513
    %638 = vmatpush1.msra.mxu0 %v512
    %639 = vmatprep.subr.mxu0 %v517
    %640 = vmatpush1.msra.mxu0 %v516
    %641 = vmatprep.subr.mxu0 %v521
    %642 = vmatpush1.msra.mxu0 %v520
    %643 = vmatprep.subr.mxu0 %v525
    %644 = vmatpush1.msra.mxu0 %v524
    %645 = vmatprep.subr.mxu0 %v529
    %646 = vmatpush1.msra.mxu0 %v528
    %647 = vmatprep.subr.mxu0 %v533
    %648 = vmatpush1.msra.mxu0 %v532
    %649 = vmatprep.subr.mxu0 %v537
    %650 = vmatpush1.msra.mxu0 %v536
    %651 = vmatprep.subr.mxu0 %v541
    %652 = vmatpush1.msra.mxu0 %v540
    %653 = vmatprep.subr.mxu0 %v545
    %654 = vmatpush1.msra.mxu0 %v544
    %655 = vmatprep.subr.mxu0 %v549
    %656 = vmatpush1.msra.mxu0 %v548
    %657 = vmatprep.subr.mxu0 %v553
    %658 = vmatpush1.msra.mxu0 %v552
    %659 = vmatprep.subr.mxu0 %v557
    %660 = vmatpush1.msra.mxu0 %v556
    %661 = vmatprep.subr.mxu0 0.0
    %662 = vmatpush1.msra.mxu0 0.0
    %663 = vmatprep.subr.mxu0 0.0
    %664 = vmatpush1.msra.mxu0 0.0
    %665 = vmatprep.subr.mxu0 0.0
    %666 = vmatpush1.msra.mxu0 0.0
    %667 = vmatprep.subr.mxu0 0.0
    %668 = vmatpush1.msra.mxu0 0.0
    %669 = vmatprep.subr.mxu0 0.0
    %670 = vmatpush1.msra.mxu0 0.0
    %671 = vmatprep.subr.mxu0 0.0
    %672 = vmatpush1.msra.mxu0 0.0
    %673 = vmatprep.subr.mxu0 0.0
    %674 = vmatpush1.msra.mxu0 0.0
    %675 = vmatprep.subr.mxu0 0.0
    %676 = vmatpush1.msra.mxu0 0.0
    %677 = vmatprep.subr.mxu0 0.0
    %678 = vmatpush1.msra.mxu0 0.0
    %679 = vmatprep.subr.mxu0 0.0
    %680 = vmatpush1.msra.mxu0 0.0
    %681 = vmatprep.subr.mxu0 0.0
    %682 = vmatpush1.msra.mxu0 0.0
    %683 = vmatprep.subr.mxu0 0.0
    %684 = vmatpush1.msra.mxu0 0.0
    %685 = vmatprep.subr.mxu0 0.0
    %686 = vmatpush1.msra.mxu0 0.0
    %687 = vmatprep.subr.mxu0 0.0
    %688 = vmatpush1.msra.mxu0 0.0
    %689 = vmatprep.subr.mxu0 0.0
    %690 = vmatpush1.msra.mxu0 0.0
    %691 = vmatprep.subr.mxu0 0.0
    %692 = vmatpush1.msra.mxu0 0.0
    %693 = vmatprep.mubr.f32.mxu0 0.0
    %694 = vmatmul.mubr.f32.gmra.mrb[0].mxu0 %v489
    %v695 = vpop.f32.mrb[0].mxu0
    %v696 = vadd.f32 0.0, %v695
    %v697 = vpop.f32.mrb[0].mxu0
    %v698 = vadd.f32 0.0, %v697
    %699 = vdwg.mxu0
    %v700 = vadd.f32 %v490, %v625
    %v701 = vadd.f32 %v491, %v627
    %v702 = vadd.f32 %v492, %v696
    %v703 = vadd.f32 %v493, %v698
    %v704 = vxor.u32 %v700, 2147483648
    %v705 = vxor.u32 %v701, 2147483648
    %v706 = vxor.u32 %v702, 2147483648
    %v707 = vmul.f32 %v704, 1.442695
    %v708 = vpow.pop %v707
    %v709 = vmul.f32 %v705, 1.442695
    %v710 = vpow.pop %v709
    %v711 = vmul.f32 %v706, 1.442695
    %v712 = vpow.pop %v711
    %v713 = vadd.f32 %v708, 1.0
    %v714 = vadd.f32 %v710, 1.0
    %v715 = vadd.f32 %v712, 1.0
    %v716 = vrcp.pop %v713
    %v717 = vmul.f32 1.0, %v716
    %v718 = vrcp.pop %v714
    %v719 = vmul.f32 1.0, %v718
    %v720 = vrcp.pop %v715
    %v721 = vmul.f32 1.0, %v720
    %v722 = vtanh.pop %v703
    %v723 = vmul.f32 %v719, %v487
    %v724 = vmul.f32 %v717, %v722
    %v725 = vadd.f32 %v723, %v724
    %v726 = vtanh.pop %v725
    %v727 = vmul.f32 %v721, %v726
    %v728 = vld [vmem:[#allocation2 + $0x40] sm:$0xff]
    %v729 = vld [vmem:[#allocation2 + $0x48] sm:$0xff]
    %v730 = vld [vmem:[#allocation2 + $0x50] sm:$0xff]
    %v731 = vld [vmem:[#allocation2 + $0x58] sm:$0xff]
    %732 = vmatprep.subr.mxu0 %v495
    %733 = vmatpush1.msra.mxu0 %v494
    %734 = vmatprep.subr.mxu0 %v499
    %735 = vmatpush1.msra.mxu0 %v498
    %736 = vmatprep.subr.mxu0 %v503
    %737 = vmatpush1.msra.mxu0 %v502
    %738 = vmatprep.subr.mxu0 %v507
    %739 = vmatpush1.msra.mxu0 %v506
    %740 = vmatprep.subr.mxu0 %v511
    %741 = vmatpush1.msra.mxu0 %v510
    %742 = vmatprep.subr.mxu0 %v515
    %743 = vmatpush1.msra.mxu0 %v514
    %744 = vmatprep.subr.mxu0 %v519
    %745 = vmatpush1.msra.mxu0 %v518
    %746 = vmatprep.subr.mxu0 %v523
    %747 = vmatpush1.msra.mxu0 %v522
    %748 = vmatprep.subr.mxu0 %v527
    %749 = vmatpush1.msra.mxu0 %v526
    %750 = vmatprep.subr.mxu0 %v531
    %751 = vmatpush1.msra.mxu0 %v530
    %752 = vmatprep.subr.mxu0 %v535
    %753 = vmatpush1.msra.mxu0 %v534
    %754 = vmatprep.subr.mxu0 %v539
    %755 = vmatpush1.msra.mxu0 %v538
    %756 = vmatprep.subr.mxu0 %v543
    %757 = vmatpush1.msra.mxu0 %v542
    %758 = vmatprep.subr.mxu0 %v547
    %759 = vmatpush1.msra.mxu0 %v546
    %760 = vmatprep.subr.mxu0 %v551
    %761 = vmatpush1.msra.mxu0 %v550
    %762 = vmatprep.subr.mxu0 %v555
    %763 = vmatpush1.msra.mxu0 %v554
    %764 = vmatprep.subr.mxu0 0.0
    %765 = vmatpush1.msra.mxu0 0.0
    %766 = vmatprep.subr.mxu0 0.0
    %767 = vmatpush1.msra.mxu0 0.0
    %768 = vmatprep.subr.mxu0 0.0
    %769 = vmatpush1.msra.mxu0 0.0
    %770 = vmatprep.subr.mxu0 0.0
    %771 = vmatpush1.msra.mxu0 0.0
    %772 = vmatprep.subr.mxu0 0.0
    %773 = vmatpush1.msra.mxu0 0.0
    %774 = vmatprep.subr.mxu0 0.0
    %775 = vmatpush1.msra.mxu0 0.0
    %776 = vmatprep.subr.mxu0 0.0
    %777 = vmatpush1.msra.mxu0 0.0
    %778 = vmatprep.subr.mxu0 0.0
    %779 = vmatpush1.msra.mxu0 0.0
    %780 = vmatprep.subr.mxu0 0.0
    %781 = vmatpush1.msra.mxu0 0.0
    %782 = vmatprep.subr.mxu0 0.0
    %783 = vmatpush1.msra.mxu0 0.0
    %784 = vmatprep.subr.mxu0 0.0
    %785 = vmatpush1.msra.mxu0 0.0
    %786 = vmatprep.subr.mxu0 0.0
    %787 = vmatpush1.msra.mxu0 0.0
    %788 = vmatprep.subr.mxu0 0.0
    %789 = vmatpush1.msra.mxu0 0.0
    %790 = vmatprep.subr.mxu0 0.0
    %791 = vmatpush1.msra.mxu0 0.0
    %792 = vmatprep.subr.mxu0 0.0
    %793 = vmatpush1.msra.mxu0 0.0
    %794 = vmatprep.subr.mxu0 0.0
    %795 = vmatpush1.msra.mxu0 0.0
    %796 = vmatprep.mubr.f32.mxu0 0.0
    %797 = vmatmul.mubr.f32.gmra.mrb[0].mxu0 %v727
    %v798 = vpop.f32.mrb[0].mxu0
    %v799 = vadd.f32 0.0, %v798
    %v800 = vpop.f32.mrb[0].mxu0
    %v801 = vadd.f32 0.0, %v800
    %802 = vdwg.mxu0
    %803 = vmatprep.subr.mxu0 %v497
    %804 = vmatpush1.msra.mxu0 %v496
    %805 = vmatprep.subr.mxu0 %v501
    %806 = vmatpush1.msra.mxu0 %v500
    %807 = vmatprep.subr.mxu0 %v505
    %808 = vmatpush1.msra.mxu0 %v504
    %809 = vmatprep.subr.mxu0 %v509
    %810 = vmatpush1.msra.mxu0 %v508
    %811 = vmatprep.subr.mxu0 %v513
    %812 = vmatpush1.msra.mxu0 %v512
    %813 = vmatprep.subr.mxu0 %v517
    %814 = vmatpush1.msra.mxu0 %v516
    %815 = vmatprep.subr.mxu0 %v521
    %816 = vmatpush1.msra.mxu0 %v520
    %817 = vmatprep.subr.mxu0 %v525
    %818 = vmatpush1.msra.mxu0 %v524
    %819 = vmatprep.subr.mxu0 %v529
    %820 = vmatpush1.msra.mxu0 %v528
    %821 = vmatprep.subr.mxu0 %v533
    %822 = vmatpush1.msra.mxu0 %v532
    %823 = vmatprep.subr.mxu0 %v537
    %824 = vmatpush1.msra.mxu0 %v536
    %825 = vmatprep.subr.mxu0 %v541
    %826 = vmatpush1.msra.mxu0 %v540
    %827 = vmatprep.subr.mxu0 %v545
    %828 = vmatpush1.msra.mxu0 %v544
    %829 = vmatprep.subr.mxu0 %v549
    %830 = vmatpush1.msra.mxu0 %v548
    %831 = vmatprep.subr.mxu0 %v553
    %832 = vmatpush1.msra.mxu0 %v552
    %833 = vmatprep.subr.mxu0 %v557
    %834 = vmatpush1.msra.mxu0 %v556
    %835 = vmatprep.subr.mxu0 0.0
    %836 = vmatpush1.msra.mxu0 0.0
    %837 = vmatprep.subr.mxu0 0.0
    %838 = vmatpush1.msra.mxu0 0.0
    %839 = vmatprep.subr.mxu0 0.0
    %840 = vmatpush1.msra.mxu0 0.0
    %841 = vmatprep.subr.mxu0 0.0
    %842 = vmatpush1.msra.mxu0 0.0
    %843 = vmatprep.subr.mxu0 0.0
    %844 = vmatpush1.msra.mxu0 0.0
    %845 = vmatprep.subr.mxu0 0.0
    %846 = vmatpush1.msra.mxu0 0.0
    %847 = vmatprep.subr.mxu0 0.0
    %848 = vmatpush1.msra.mxu0 0.0
    %849 = vmatprep.subr.mxu0 0.0
    %850 = vmatpush1.msra.mxu0 0.0
    %851 = vmatprep.subr.mxu0 0.0
    %852 = vmatpush1.msra.mxu0 0.0
    %853 = vmatprep.subr.mxu0 0.0
    %854 = vmatpush1.msra.mxu0 0.0
    %855 = vmatprep.subr.mxu0 0.0
    %856 = vmatpush1.msra.mxu0 0.0
    %857 = vmatprep.subr.mxu0 0.0
    %858 = vmatpush1.msra.mxu0 0.0
    %859 = vmatprep.subr.mxu0 0.0
    %860 = vmatpush1.msra.mxu0 0.0
    %861 = vmatprep.subr.mxu0 0.0
    %862 = vmatpush1.msra.mxu0 0.0
    %863 = vmatprep.subr.mxu0 0.0
    %864 = vmatpush1.msra.mxu0 0.0
    %865 = vmatprep.subr.mxu0 0.0
    %866 = vmatpush1.msra.mxu0 0.0
    %867 = vmatprep.mubr.f32.mxu0 0.0
    %868 = vmatmul.mubr.f32.gmra.mrb[0].mxu0 %v727
    %v869 = vpop.f32.mrb[0].mxu0
    %v870 = vadd.f32 0.0, %v869
    %v871 = vpop.f32.mrb[0].mxu0
    %v872 = vadd.f32 0.0, %v871
    %873 = vdwg.mxu0
    %v874 = vadd.f32 %v728, %v799
    %v875 = vadd.f32 %v729, %v801
    %v876 = vadd.f32 %v730, %v870
    %v877 = vadd.f32 %v731, %v872
    %v878 = vxor.u32 %v874, 2147483648
    %v879 = vxor.u32 %v875, 2147483648
    %v880 = vxor.u32 %v876, 2147483648
    %v881 = vmul.f32 %v878, 1.442695
    %v882 = vpow.pop %v881
    %v883 = vmul.f32 %v879, 1.442695
    %v884 = vpow.pop %v883
    %v885 = vmul.f32 %v880, 1.442695
    %v886 = vpow.pop %v885
    %v887 = vadd.f32 %v882, 1.0
    %v888 = vadd.f32 %v884, 1.0
    %v889 = vadd.f32 %v886, 1.0
    %v890 = vrcp.pop %v887
    %v891 = vmul.f32 1.0, %v890
    %v892 = vrcp.pop %v888
    %v893 = vmul.f32 1.0, %v892
    %v894 = vrcp.pop %v889
    %v895 = vmul.f32 1.0, %v894
    %v896 = vtanh.pop %v877
    %v897 = vmul.f32 %v893, %v725
    %v898 = vmul.f32 %v891, %v896
    %v899 = vadd.f32 %v897, %v898
    %v900 = vtanh.pop %v899
    %v901 = vmul.f32 %v895, %v900
    %v902 = vld [vmem:[#allocation2 + $0x60] sm:$0xff]
    %v903 = vld [vmem:[#allocation2 + $0x68] sm:$0xff]
    %v904 = vld [vmem:[#allocation2 + $0x70] sm:$0xff]
    %v905 = vld [vmem:[#allocation2 + $0x78] sm:$0xff]
    %906 = vmatprep.subr.mxu0 %v495
    %907 = vmatpush1.msra.mxu0 %v494
    %908 = vmatprep.subr.mxu0 %v499
    %909 = vmatpush1.msra.mxu0 %v498
    %910 = vmatprep.subr.mxu0 %v503
    %911 = vmatpush1.msra.mxu0 %v502
    %912 = vmatprep.subr.mxu0 %v507
    %913 = vmatpush1.msra.mxu0 %v506
    %914 = vmatprep.subr.mxu0 %v511
    %915 = vmatpush1.msra.mxu0 %v510
    %916 = vmatprep.subr.mxu0 %v515
    %917 = vmatpush1.msra.mxu0 %v514
    %918 = vmatprep.subr.mxu0 %v519
    %919 = vmatpush1.msra.mxu0 %v518
    %920 = vmatprep.subr.mxu0 %v523
    %921 = vmatpush1.msra.mxu0 %v522
    %922 = vmatprep.subr.mxu0 %v527
    %923 = vmatpush1.msra.mxu0 %v526
    %924 = vmatprep.subr.mxu0 %v531
    %925 = vmatpush1.msra.mxu0 %v530
    %926 = vmatprep.subr.mxu0 %v535
    %927 = vmatpush1.msra.mxu0 %v534
    %928 = vmatprep.subr.mxu0 %v539
    %929 = vmatpush1.msra.mxu0 %v538
    %930 = vmatprep.subr.mxu0 %v543
    %931 = vmatpush1.msra.mxu0 %v542
    %932 = vmatprep.subr.mxu0 %v547
    %933 = vmatpush1.msra.mxu0 %v546
    %934 = vmatprep.subr.mxu0 %v551
    %935 = vmatpush1.msra.mxu0 %v550
    %936 = vmatprep.subr.mxu0 %v555
    %937 = vmatpush1.msra.mxu0 %v554
    %938 = vmatprep.subr.mxu0 0.0
    %939 = vmatpush1.msra.mxu0 0.0
    %940 = vmatprep.subr.mxu0 0.0
    %941 = vmatpush1.msra.mxu0 0.0
    %942 = vmatprep.subr.mxu0 0.0
    %943 = vmatpush1.msra.mxu0 0.0
    %944 = vmatprep.subr.mxu0 0.0
    %945 = vmatpush1.msra.mxu0 0.0
    %946 = vmatprep.subr.mxu0 0.0
    %947 = vmatpush1.msra.mxu0 0.0
    %948 = vmatprep.subr.mxu0 0.0
    %949 = vmatpush1.msra.mxu0 0.0
    %950 = vmatprep.subr.mxu0 0.0
    %951 = vmatpush1.msra.mxu0 0.0
    %952 = vmatprep.subr.mxu0 0.0
    %953 = vmatpush1.msra.mxu0 0.0
    %954 = vmatprep.subr.mxu0 0.0
    %955 = vmatpush1.msra.mxu0 0.0
    %956 = vmatprep.subr.mxu0 0.0
    %957 = vmatpush1.msra.mxu0 0.0
    %958 = vmatprep.subr.mxu0 0.0
    %959 = vmatpush1.msra.mxu0 0.0
    %960 = vmatprep.subr.mxu0 0.0
    %961 = vmatpush1.msra.mxu0 0.0
    %962 = vmatprep.subr.mxu0 0.0
    %963 = vmatpush1.msra.mxu0 0.0
    %964 = vmatprep.subr.mxu0 0.0
    %965 = vmatpush1.msra.mxu0 0.0
    %966 = vmatprep.subr.mxu0 0.0
    %967 = vmatpush1.msra.mxu0 0.0
    %968 = vmatprep.subr.mxu0 0.0
    %969 = vmatpush1.msra.mxu0 0.0
    %970 = vmatprep.mubr.f32.mxu0 0.0
    %971 = vmatmul.mubr.f32.gmra.mrb[0].mxu0 %v901
    %v972 = vpop.f32.mrb[0].mxu0
    %v973 = vadd.f32 0.0, %v972
    %v974 = vpop.f32.mrb[0].mxu0
    %v975 = vadd.f32 0.0, %v974
    %976 = vdwg.mxu0
    %977 = vmatprep.subr.mxu0 %v497
    %978 = vmatpush1.msra.mxu0 %v496
    %979 = vmatprep.subr.mxu0 %v501
    %980 = vmatpush1.msra.mxu0 %v500
    %981 = vmatprep.subr.mxu0 %v505
    %982 = vmatpush1.msra.mxu0 %v504
    %983 = vmatprep.subr.mxu0 %v509
    %984 = vmatpush1.msra.mxu0 %v508
    %985 = vmatprep.subr.mxu0 %v513
    %986 = vmatpush1.msra.mxu0 %v512
    %987 = vmatprep.subr.mxu0 %v517
    %988 = vmatpush1.msra.mxu0 %v516
    %989 = vmatprep.subr.mxu0 %v521
    %990 = vmatpush1.msra.mxu0 %v520
    %991 = vmatprep.subr.mxu0 %v525
    %992 = vmatpush1.msra.mxu0 %v524
    %993 = vmatprep.subr.mxu0 %v529
    %994 = vmatpush1.msra.mxu0 %v528
    %995 = vmatprep.subr.mxu0 %v533
    %996 = vmatpush1.msra.mxu0 %v532
    %997 = vmatprep.subr.mxu0 %v537
    %998 = vmatpush1.msra.mxu0 %v536
    %999 = vmatprep.subr.mxu0 %v541
    %1000 = vmatpush1.msra.mxu0 %v540
    %1001 = vmatprep.subr.mxu0 %v545
    %1002 = vmatpush1.msra.mxu0 %v544
    %1003 = vmatprep.subr.mxu0 %v549
    %1004 = vmatpush1.msra.mxu0 %v548
    %1005 = vmatprep.subr.mxu0 %v553
    %1006 = vmatpush1.msra.mxu0 %v552
    %1007 = vmatprep.subr.mxu0 %v557
    %1008 = vmatpush1.msra.mxu0 %v556
    %1009 = vmatprep.subr.mxu0 0.0
    %1010 = vmatpush1.msra.mxu0 0.0
    %1011 = vmatprep.subr.mxu0 0.0
    %1012 = vmatpush1.msra.mxu0 0.0
    %1013 = vmatprep.subr.mxu0 0.0
    %1014 = vmatpush1.msra.mxu0 0.0
    %1015 = vmatprep.subr.mxu0 0.0
    %1016 = vmatpush1.msra.mxu0 0.0
    %1017 = vmatprep.subr.mxu0 0.0
    %1018 = vmatpush1.msra.mxu0 0.0
    %1019 = vmatprep.subr.mxu0 0.0
    %1020 = vmatpush1.msra.mxu0 0.0
    %1021 = vmatprep.subr.mxu0 0.0
    %1022 = vmatpush1.msra.mxu0 0.0
    %1023 = vmatprep.subr.mxu0 0.0
    %1024 = vmatpush1.msra.mxu0 0.0
    %1025 = vmatprep.subr.mxu0 0.0
    %1026 = vmatpush1.msra.mxu0 0.0
    %1027 = vmatprep.subr.mxu0 0.0
    %1028 = vmatpush1.msra.mxu0 0.0
    %1029 = vmatprep.subr.mxu0 0.0
    %1030 = vmatpush1.msra.mxu0 0.0
    %1031 = vmatprep.subr.mxu0 0.0
    %1032 = vmatpush1.msra.mxu0 0.0
    %1033 = vmatprep.subr.mxu0 0.0
    %1034 = vmatpush1.msra.mxu0 0.0
    %1035 = vmatprep.subr.mxu0 0.0
    %1036 = vmatpush1.msra.mxu0 0.0
    %1037 = vmatprep.subr.mxu0 0.0
    %1038 = vmatpush1.msra.mxu0 0.0
    %1039 = vmatprep.subr.mxu0 0.0
    %1040 = vmatpush1.msra.mxu0 0.0
    %1041 = vmatprep.mubr.f32.mxu0 0.0
    %1042 = vmatmul.mubr.f32.gmra.mrb[0].mxu0 %v901
    %v1043 = vpop.f32.mrb[0].mxu0
    %v1044 = vadd.f32 0.0, %v1043
    %v1045 = vpop.f32.mrb[0].mxu0
    %v1046 = vadd.f32 0.0, %v1045
    %1047 = vdwg.mxu0
    %v1048 = vadd.f32 %v902, %v973
    %v1049 = vadd.f32 %v903, %v975
    %v1050 = vadd.f32 %v904, %v1044
    %v1051 = vadd.f32 %v905, %v1046
    %v1052 = vxor.u32 %v1048, 2147483648
    %v1053 = vxor.u32 %v1049, 2147483648
    %v1054 = vxor.u32 %v1050, 2147483648
    %v1055 = vmul.f32 %v1052, 1.442695
    %v1056 = vpow.pop %v1055
    %v1057 = vmul.f32 %v1053, 1.442695
    %v1058 = vpow.pop %v1057
    %v1059 = vmul.f32 %v1054, 1.442695
    %v1060 = vpow.pop %v1059
    %v1061 = vadd.f32 %v1056, 1.0
    %v1062 = vadd.f32 %v1058, 1.0
    %v1063 = vadd.f32 %v1060, 1.0
    %v1064 = vrcp.pop %v1061
    %v1065 = vmul.f32 1.0, %v1064
    %v1066 = vrcp.pop %v1062
    %v1067 = vmul.f32 1.0, %v1066
    %v1068 = vrcp.pop %v1063
    %v1069 = vmul.f32 1.0, %v1068
    %v1070 = vtanh.pop %v1051
    %v1071 = vmul.f32 %v1067, %v899
    %v1072 = vmul.f32 %v1065, %v1070
    %v1073 = vadd.f32 %v1071, %v1072
    %v1074 = vtanh.pop %v1073
    %v1075 = vmul.f32 %v1069, %v1074
    %v1076 = vld [vmem:[#allocation2 + $0x80] sm:$0xff]
    %v1077 = vld [vmem:[#allocation2 + $0x88] sm:$0xff]
    %v1078 = vld [vmem:[#allocation2 + $0x90] sm:$0xff]
    %v1079 = vld [vmem:[#allocation2 + $0x98] sm:$0xff]
    %1080 = vmatprep.subr.mxu0 %v495
    %1081 = vmatpush1.msra.mxu0 %v494
    %1082 = vmatprep.subr.mxu0 %v499
    %1083 = vmatpush1.msra.mxu0 %v498
    %1084 = vmatprep.subr.mxu0 %v503
    %1085 = vmatpush1.msra.mxu0 %v502
    %1086 = vmatprep.subr.mxu0 %v507
    %1087 = vmatpush1.msra.mxu0 %v506
    %1088 = vmatprep.subr.mxu0 %v511
    %1089 = vmatpush1.msra.mxu0 %v510
    %1090 = vmatprep.subr.mxu0 %v515
    %1091 = vmatpush1.msra.mxu0 %v514
    %1092 = vmatprep.subr.mxu0 %v519
    %1093 = vmatpush1.msra.mxu0 %v518
    %1094 = vmatprep.subr.mxu0 %v523
    %1095 = vmatpush1.msra.mxu0 %v522
    %1096 = vmatprep.subr.mxu0 %v527
    %1097 = vmatpush1.msra.mxu0 %v526
    %1098 = vmatprep.subr.mxu0 %v531
    %1099 = vmatpush1.msra.mxu0 %v530
    %1100 = vmatprep.subr.mxu0 %v535
    %1101 = vmatpush1.msra.mxu0 %v534
    %1102 = vmatprep.subr.mxu0 %v539
    %1103 = vmatpush1.msra.mxu0 %v538
    %1104 = vmatprep.subr.mxu0 %v543
    %1105 = vmatpush1.msra.mxu0 %v542
    %1106 = vmatprep.subr.mxu0 %v547
    %1107 = vmatpush1.msra.mxu0 %v546
    %1108 = vmatprep.subr.mxu0 %v551
    %1109 = vmatpush1.msra.mxu0 %v550
    %1110 = vmatprep.subr.mxu0 %v555
    %1111 = vmatpush1.msra.mxu0 %v554
    %1112 = vmatprep.subr.mxu0 0.0
    %1113 = vmatpush1.msra.mxu0 0.0
    %1114 = vmatprep.subr.mxu0 0.0
    %1115 = vmatpush1.msra.mxu0 0.0
    %1116 = vmatprep.subr.mxu0 0.0
    %1117 = vmatpush1.msra.mxu0 0.0
    %1118 = vmatprep.subr.mxu0 0.0
    %1119 = vmatpush1.msra.mxu0 0.0
    %1120 = vmatprep.subr.mxu0 0.0
    %1121 = vmatpush1.msra.mxu0 0.0
    %1122 = vmatprep.subr.mxu0 0.0
    %1123 = vmatpush1.msra.mxu0 0.0
    %1124 = vmatprep.subr.mxu0 0.0
    %1125 = vmatpush1.msra.mxu0 0.0
    %1126 = vmatprep.subr.mxu0 0.0
    %1127 = vmatpush1.msra.mxu0 0.0
    %1128 = vmatprep.subr.mxu0 0.0
    %1129 = vmatpush1.msra.mxu0 0.0
    %1130 = vmatprep.subr.mxu0 0.0
    %1131 = vmatpush1.msra.mxu0 0.0
    %1132 = vmatprep.subr.mxu0 0.0
    %1133 = vmatpush1.msra.mxu0 0.0
    %1134 = vmatprep.subr.mxu0 0.0
    %1135 = vmatpush1.msra.mxu0 0.0
    %1136 = vmatprep.subr.mxu0 0.0
    %1137 = vmatpush1.msra.mxu0 0.0
    %1138 = vmatprep.subr.mxu0 0.0
    %1139 = vmatpush1.msra.mxu0 0.0
    %1140 = vmatprep.subr.mxu0 0.0
    %1141 = vmatpush1.msra.mxu0 0.0
    %1142 = vmatprep.subr.mxu0 0.0
    %1143 = vmatpush1.msra.mxu0 0.0
    %1144 = vmatprep.mubr.f32.mxu0 0.0
    %1145 = vmatmul.mubr.f32.gmra.mrb[0].mxu0 %v1075
    %v1146 = vpop.f32.mrb[0].mxu0
    %v1147 = vadd.f32 0.0, %v1146
    %v1148 = vpop.f32.mrb[0].mxu0
    %v1149 = vadd.f32 0.0, %v1148
    %1150 = vdwg.mxu0
    %1151 = vmatprep.subr.mxu0 %v497
    %1152 = vmatpush1.msra.mxu0 %v496
    %1153 = vmatprep.subr.mxu0 %v501
    %1154 = vmatpush1.msra.mxu0 %v500
    %1155 = vmatprep.subr.mxu0 %v505
    %1156 = vmatpush1.msra.mxu0 %v504
    %1157 = vmatprep.subr.mxu0 %v509
    %1158 = vmatpush1.msra.mxu0 %v508
    %1159 = vmatprep.subr.mxu0 %v513
    %1160 = vmatpush1.msra.mxu0 %v512
    %1161 = vmatprep.subr.mxu0 %v517
    %1162 = vmatpush1.msra.mxu0 %v516
    %1163 = vmatprep.subr.mxu0 %v521
    %1164 = vmatpush1.msra.mxu0 %v520
    %1165 = vmatprep.subr.mxu0 %v525
    %1166 = vmatpush1.msra.mxu0 %v524
    %1167 = vmatprep.subr.mxu0 %v529
    %1168 = vmatpush1.msra.mxu0 %v528
    %1169 = vmatprep.subr.mxu0 %v533
    %1170 = vmatpush1.msra.mxu0 %v532
    %1171 = vmatprep.subr.mxu0 %v537
    %1172 = vmatpush1.msra.mxu0 %v536
    %1173 = vmatprep.subr.mxu0 %v541
    %1174 = vmatpush1.msra.mxu0 %v540
    %1175 = vmatprep.subr.mxu0 %v545
    %1176 = vmatpush1.msra.mxu0 %v544
    %1177 = vmatprep.subr.mxu0 %v549
    %1178 = vmatpush1.msra.mxu0 %v548
    %1179 = vmatprep.subr.mxu0 %v553
    %1180 = vmatpush1.msra.mxu0 %v552
    %1181 = vmatprep.subr.mxu0 %v557
    %1182 = vmatpush1.msra.mxu0 %v556
    %1183 = vmatprep.subr.mxu0 0.0
    %1184 = vmatpush1.msra.mxu0 0.0
    %1185 = vmatprep.subr.mxu0 0.0
    %1186 = vmatpush1.msra.mxu0 0.0
    %1187 = vmatprep.subr.mxu0 0.0
    %1188 = vmatpush1.msra.mxu0 0.0
    %1189 = vmatprep.subr.mxu0 0.0
    %1190 = vmatpush1.msra.mxu0 0.0
    %1191 = vmatprep.subr.mxu0 0.0
    %1192 = vmatpush1.msra.mxu0 0.0
    %1193 = vmatprep.subr.mxu0 0.0
    %1194 = vmatpush1.msra.mxu0 0.0
    %1195 = vmatprep.subr.mxu0 0.0
    %1196 = vmatpush1.msra.mxu0 0.0
    %1197 = vmatprep.subr.mxu0 0.0
    %1198 = vmatpush1.msra.mxu0 0.0
    %1199 = vmatprep.subr.mxu0 0.0
    %1200 = vmatpush1.msra.mxu0 0.0
    %1201 = vmatprep.subr.mxu0 0.0
    %1202 = vmatpush1.msra.mxu0 0.0
    %1203 = vmatprep.subr.mxu0 0.0
    %1204 = vmatpush1.msra.mxu0 0.0
    %1205 = vmatprep.subr.mxu0 0.0
    %1206 = vmatpush1.msra.mxu0 0.0
    %1207 = vmatprep.subr.mxu0 0.0
    %1208 = vmatpush1.msra.mxu0 0.0
    %1209 = vmatprep.subr.mxu0 0.0
    %1210 = vmatpush1.msra.mxu0 0.0
    %1211 = vmatprep.subr.mxu0 0.0
    %1212 = vmatpush1.msra.mxu0 0.0
    %1213 = vmatprep.subr.mxu0 0.0
    %1214 = vmatpush1.msra.mxu0 0.0
    %1215 = vmatprep.mubr.f32.mxu0 0.0
    %1216 = vmatmul.mubr.f32.gmra.mrb[0].mxu0 %v1075
    %v1217 = vpop.f32.mrb[0].mxu0
    %v1218 = vadd.f32 0.0, %v1217
    %v1219 = vpop.f32.mrb[0].mxu0
    %v1220 = vadd.f32 0.0, %v1219
    %1221 = vdwg.mxu0
    %v1222 = vadd.f32 %v1076, %v1147
    %v1223 = vadd.f32 %v1077, %v1149
    %v1224 = vadd.f32 %v1078, %v1218
    %v1225 = vadd.f32 %v1079, %v1220
    %v1226 = vxor.u32 %v1222, 2147483648
    %v1227 = vxor.u32 %v1223, 2147483648
    %v1228 = vxor.u32 %v1224, 2147483648
    %v1229 = vmul.f32 %v1226, 1.442695
    %v1230 = vpow.pop %v1229
    %v1231 = vmul.f32 %v1227, 1.442695
    %v1232 = vpow.pop %v1231
    %v1233 = vmul.f32 %v1228, 1.442695
    %v1234 = vpow.pop %v1233
    %v1235 = vadd.f32 %v1230, 1.0
    %v1236 = vadd.f32 %v1232, 1.0
    %v1237 = vadd.f32 %v1234, 1.0
    %v1238 = vrcp.pop %v1235
    %v1239 = vmul.f32 1.0, %v1238
    %v1240 = vrcp.pop %v1236
    %v1241 = vmul.f32 1.0, %v1240
    %v1242 = vrcp.pop %v1237
    %v1243 = vmul.f32 1.0, %v1242
    %v1244 = vtanh.pop %v1225
    %v1245 = vmul.f32 %v1241, %v1073
    %v1246 = vmul.f32 %v1239, %v1244
    %v1247 = vadd.f32 %v1245, %v1246
    %v1248 = vtanh.pop %v1247
    %v1249 = vmul.f32 %v1243, %v1248
    %v1250 = vld [vmem:[#allocation2 + $0xa0] sm:$0xff]
    %v1251 = vld [vmem:[#allocation2 + $0xa8] sm:$0xff]
    %v1252 = vld [vmem:[#allocation2 + $0xb0] sm:$0xff]
    %v1253 = vld [vmem:[#allocation2 + $0xb8] sm:$0xff]
    %1254 = vmatprep.subr.mxu0 %v495
    %1255 = vmatpush1.msra.mxu0 %v494
    %1256 = vmatprep.subr.mxu0 %v499
    %1257 = vmatpush1.msra.mxu0 %v498
    %1258 = vmatprep.subr.mxu0 %v503
    %1259 = vmatpush1.msra.mxu0 %v502
    %1260 = vmatprep.subr.mxu0 %v507
    %1261 = vmatpush1.msra.mxu0 %v506
    %1262 = vmatprep.subr.mxu0 %v511
    %1263 = vmatpush1.msra.mxu0 %v510
    %1264 = vmatprep.subr.mxu0 %v515
    %1265 = vmatpush1.msra.mxu0 %v514
    %1266 = vmatprep.subr.mxu0 %v519
    %1267 = vmatpush1.msra.mxu0 %v518
    %1268 = vmatprep.subr.mxu0 %v523
    %1269 = vmatpush1.msra.mxu0 %v522
    %1270 = vmatprep.subr.mxu0 %v527
    %1271 = vmatpush1.msra.mxu0 %v526
    %1272 = vmatprep.subr.mxu0 %v531
    %1273 = vmatpush1.msra.mxu0 %v530
    %1274 = vmatprep.subr.mxu0 %v535
    %1275 = vmatpush1.msra.mxu0 %v534
    %1276 = vmatprep.subr.mxu0 %v539
    %1277 = vmatpush1.msra.mxu0 %v538
    %1278 = vmatprep.subr.mxu0 %v543
    %1279 = vmatpush1.msra.mxu0 %v542
    %1280 = vmatprep.subr.mxu0 %v547
    %1281 = vmatpush1.msra.mxu0 %v546
    %1282 = vmatprep.subr.mxu0 %v551
    %1283 = vmatpush1.msra.mxu0 %v550
    %1284 = vmatprep.subr.mxu0 %v555
    %1285 = vmatpush1.msra.mxu0 %v554
    %1286 = vmatprep.subr.mxu0 0.0
    %1287 = vmatpush1.msra.mxu0 0.0
    %1288 = vmatprep.subr.mxu0 0.0
    %1289 = vmatpush1.msra.mxu0 0.0
    %1290 = vmatprep.subr.mxu0 0.0
    %1291 = vmatpush1.msra.mxu0 0.0
    %1292 = vmatprep.subr.mxu0 0.0
    %1293 = vmatpush1.msra.mxu0 0.0
    %1294 = vmatprep.subr.mxu0 0.0
    %1295 = vmatpush1.msra.mxu0 0.0
    %1296 = vmatprep.subr.mxu0 0.0
    %1297 = vmatpush1.msra.mxu0 0.0
    %1298 = vmatprep.subr.mxu0 0.0
    %1299 = vmatpush1.msra.mxu0 0.0
    %1300 = vmatprep.subr.mxu0 0.0
    %1301 = vmatpush1.msra.mxu0 0.0
    %1302 = vmatprep.subr.mxu0 0.0
    %1303 = vmatpush1.msra.mxu0 0.0
    %1304 = vmatprep.subr.mxu0 0.0
    %1305 = vmatpush1.msra.mxu0 0.0
    %1306 = vmatprep.subr.mxu0 0.0
    %1307 = vmatpush1.msra.mxu0 0.0
    %1308 = vmatprep.subr.mxu0 0.0
    %1309 = vmatpush1.msra.mxu0 0.0
    %1310 = vmatprep.subr.mxu0 0.0
    %1311 = vmatpush1.msra.mxu0 0.0
    %1312 = vmatprep.subr.mxu0 0.0
    %1313 = vmatpush1.msra.mxu0 0.0
    %1314 = vmatprep.subr.mxu0 0.0
    %1315 = vmatpush1.msra.mxu0 0.0
    %1316 = vmatprep.subr.mxu0 0.0
    %1317 = vmatpush1.msra.mxu0 0.0
    %1318 = vmatprep.mubr.f32.mxu0 0.0
    %1319 = vmatmul.mubr.f32.gmra.mrb[0].mxu0 %v1249
    %v1320 = vpop.f32.mrb[0].mxu0
    %v1321 = vadd.f32 0.0, %v1320
    %v1322 = vpop.f32.mrb[0].mxu0
    %v1323 = vadd.f32 0.0, %v1322
    %1324 = vdwg.mxu0
    %1325 = vmatprep.subr.mxu0 %v497
    %1326 = vmatpush1.msra.mxu0 %v496
    %1327 = vmatprep.subr.mxu0 %v501
    %1328 = vmatpush1.msra.mxu0 %v500
    %1329 = vmatprep.subr.mxu0 %v505
    %1330 = vmatpush1.msra.mxu0 %v504
    %1331 = vmatprep.subr.mxu0 %v509
    %1332 = vmatpush1.msra.mxu0 %v508
    %1333 = vmatprep.subr.mxu0 %v513
    %1334 = vmatpush1.msra.mxu0 %v512
    %1335 = vmatprep.subr.mxu0 %v517
    %1336 = vmatpush1.msra.mxu0 %v516
    %1337 = vmatprep.subr.mxu0 %v521
    %1338 = vmatpush1.msra.mxu0 %v520
    %1339 = vmatprep.subr.mxu0 %v525
    %1340 = vmatpush1.msra.mxu0 %v524
    %1341 = vmatprep.subr.mxu0 %v529
    %1342 = vmatpush1.msra.mxu0 %v528
    %1343 = vmatprep.subr.mxu0 %v533
    %1344 = vmatpush1.msra.mxu0 %v532
    %1345 = vmatprep.subr.mxu0 %v537
    %1346 = vmatpush1.msra.mxu0 %v536
    %1347 = vmatprep.subr.mxu0 %v541
    %1348 = vmatpush1.msra.mxu0 %v540
    %1349 = vmatprep.subr.mxu0 %v545
    %1350 = vmatpush1.msra.mxu0 %v544
    %1351 = vmatprep.subr.mxu0 %v549
    %1352 = vmatpush1.msra.mxu0 %v548
    %1353 = vmatprep.subr.mxu0 %v553
    %1354 = vmatpush1.msra.mxu0 %v552
    %1355 = vmatprep.subr.mxu0 %v557
    %1356 = vmatpush1.msra.mxu0 %v556
    %1357 = vmatprep.subr.mxu0 0.0
    %1358 = vmatpush1.msra.mxu0 0.0
    %1359 = vmatprep.subr.mxu0 0.0
    %1360 = vmatpush1.msra.mxu0 0.0
    %1361 = vmatprep.subr.mxu0 0.0
    %1362 = vmatpush1.msra.mxu0 0.0
    %1363 = vmatprep.subr.mxu0 0.0
    %1364 = vmatpush1.msra.mxu0 0.0
    %1365 = vmatprep.subr.mxu0 0.0
    %1366 = vmatpush1.msra.mxu0 0.0
    %1367 = vmatprep.subr.mxu0 0.0
    %1368 = vmatpush1.msra.mxu0 0.0
    %1369 = vmatprep.subr.mxu0 0.0
    %1370 = vmatpush1.msra.mxu0 0.0
    %1371 = vmatprep.subr.mxu0 0.0
    %1372 = vmatpush1.msra.mxu0 0.0
    %1373 = vmatprep.subr.mxu0 0.0
    %1374 = vmatpush1.msra.mxu0 0.0
    %1375 = vmatprep.subr.mxu0 0.0
    %1376 = vmatpush1.msra.mxu0 0.0
    %1377 = vmatprep.subr.mxu0 0.0
    %1378 = vmatpush1.msra.mxu0 0.0
    %1379 = vmatprep.subr.mxu0 0.0
    %1380 = vmatpush1.msra.mxu0 0.0
    %1381 = vmatprep.subr.mxu0 0.0
    %1382 = vmatpush1.msra.mxu0 0.0
    %1383 = vmatprep.subr.mxu0 0.0
    %1384 = vmatpush1.msra.mxu0 0.0
    %1385 = vmatprep.subr.mxu0 0.0
    %1386 = vmatpush1.msra.mxu0 0.0
    %1387 = vmatprep.subr.mxu0 0.0
    %1388 = vmatpush1.msra.mxu0 0.0
    %1389 = vmatprep.mubr.f32.mxu0 0.0
    %1390 = vmatmul.mubr.f32.gmra.mrb[0].mxu0 %v1249
    %v1391 = vpop.f32.mrb[0].mxu0
    %v1392 = vadd.f32 0.0, %v1391
    %v1393 = vpop.f32.mrb[0].mxu0
    %v1394 = vadd.f32 0.0, %v1393
    %1395 = vdwg.mxu0
    %v1396 = vadd.f32 %v1250, %v1321
    %v1397 = vadd.f32 %v1251, %v1323
    %v1398 = vadd.f32 %v1252, %v1392
    %v1399 = vadd.f32 %v1253, %v1394
    %v1400 = vxor.u32 %v1396, 2147483648
    %v1401 = vxor.u32 %v1397, 2147483648
    %v1402 = vxor.u32 %v1398, 2147483648
    %v1403 = vmul.f32 %v1400, 1.442695
    %v1404 = vpow.pop %v1403
    %v1405 = vmul.f32 %v1401, 1.442695
    %v1406 = vpow.pop %v1405
    %v1407 = vmul.f32 %v1402, 1.442695
    %v1408 = vpow.pop %v1407
    %v1409 = vadd.f32 %v1404, 1.0
    %v1410 = vadd.f32 %v1406, 1.0
    %v1411 = vadd.f32 %v1408, 1.0
    %v1412 = vrcp.pop %v1409
    %v1413 = vmul.f32 1.0, %v1412
    %v1414 = vrcp.pop %v1410
    %v1415 = vmul.f32 1.0, %v1414
    %v1416 = vrcp.pop %v1411
    %v1417 = vmul.f32 1.0, %v1416
    %v1418 = vtanh.pop %v1399
    %v1419 = vmul.f32 %v1415, %v1247
    %v1420 = vmul.f32 %v1413, %v1418
    %v1421 = vadd.f32 %v1419, %v1420
    %v1422 = vtanh.pop %v1421
    %v1423 = vmul.f32 %v1417, %v1422
    %v1424 = vld [vmem:[#allocation2 + $0xc0] sm:$0xff]
    %v1425 = vld [vmem:[#allocation2 + $0xc8] sm:$0xff]
    %v1426 = vld [vmem:[#allocation2 + $0xd0] sm:$0xff]
    %v1427 = vld [vmem:[#allocation2 + $0xd8] sm:$0xff]
    %1428 = vmatprep.subr.mxu0 %v495
    %1429 = vmatpush1.msra.mxu0 %v494
    %1430 = vmatprep.subr.mxu0 %v499
    %1431 = vmatpush1.msra.mxu0 %v498
    %1432 = vmatprep.subr.mxu0 %v503
    %1433 = vmatpush1.msra.mxu0 %v502
    %1434 = vmatprep.subr.mxu0 %v507
    %1435 = vmatpush1.msra.mxu0 %v506
    %1436 = vmatprep.subr.mxu0 %v511
    %1437 = vmatpush1.msra.mxu0 %v510
    %1438 = vmatprep.subr.mxu0 %v515
    %1439 = vmatpush1.msra.mxu0 %v514
    %1440 = vmatprep.subr.mxu0 %v519
    %1441 = vmatpush1.msra.mxu0 %v518
    %1442 = vmatprep.subr.mxu0 %v523
    %1443 = vmatpush1.msra.mxu0 %v522
    %1444 = vmatprep.subr.mxu0 %v527
    %1445 = vmatpush1.msra.mxu0 %v526
    %1446 = vmatprep.subr.mxu0 %v531
    %1447 = vmatpush1.msra.mxu0 %v530
    %1448 = vmatprep.subr.mxu0 %v535
    %1449 = vmatpush1.msra.mxu0 %v534
    %1450 = vmatprep.subr.mxu0 %v539
    %1451 = vmatpush1.msra.mxu0 %v538
    %1452 = vmatprep.subr.mxu0 %v543
    %1453 = vmatpush1.msra.mxu0 %v542
    %1454 = vmatprep.subr.mxu0 %v547
    %1455 = vmatpush1.msra.mxu0 %v546
    %1456 = vmatprep.subr.mxu0 %v551
    %1457 = vmatpush1.msra.mxu0 %v550
    %1458 = vmatprep.subr.mxu0 %v555
    %1459 = vmatpush1.msra.mxu0 %v554
    %1460 = vmatprep.subr.mxu0 0.0
    %1461 = vmatpush1.msra.mxu0 0.0
    %1462 = vmatprep.subr.mxu0 0.0
    %1463 = vmatpush1.msra.mxu0 0.0
    %1464 = vmatprep.subr.mxu0 0.0
    %1465 = vmatpush1.msra.mxu0 0.0
    %1466 = vmatprep.subr.mxu0 0.0
    %1467 = vmatpush1.msra.mxu0 0.0
    %1468 = vmatprep.subr.mxu0 0.0
    %1469 = vmatpush1.msra.mxu0 0.0
    %1470 = vmatprep.subr.mxu0 0.0
    %1471 = vmatpush1.msra.mxu0 0.0
    %1472 = vmatprep.subr.mxu0 0.0
    %1473 = vmatpush1.msra.mxu0 0.0
    %1474 = vmatprep.subr.mxu0 0.0
    %1475 = vmatpush1.msra.mxu0 0.0
    %1476 = vmatprep.subr.mxu0 0.0
    %1477 = vmatpush1.msra.mxu0 0.0
    %1478 = vmatprep.subr.mxu0 0.0
    %1479 = vmatpush1.msra.mxu0 0.0
    %1480 = vmatprep.subr.mxu0 0.0
    %1481 = vmatpush1.msra.mxu0 0.0
    %1482 = vmatprep.subr.mxu0 0.0
    %1483 = vmatpush1.msra.mxu0 0.0
    %1484 = vmatprep.subr.mxu0 0.0
    %1485 = vmatpush1.msra.mxu0 0.0
    %1486 = vmatprep.subr.mxu0 0.0
    %1487 = vmatpush1.msra.mxu0 0.0
    %1488 = vmatprep.subr.mxu0 0.0
    %1489 = vmatpush1.msra.mxu0 0.0
    %1490 = vmatprep.subr.mxu0 0.0
    %1491 = vmatpush1.msra.mxu0 0.0
    %1492 = vmatprep.mubr.f32.mxu0 0.0
    %1493 = vmatmul.mubr.f32.gmra.mrb[0].mxu0 %v1423
    %v1494 = vpop.f32.mrb[0].mxu0
    %v1495 = vadd.f32 0.0, %v1494
    %v1496 = vpop.f32.mrb[0].mxu0
    %v1497 = vadd.f32 0.0, %v1496
    %1498 = vdwg.mxu0
    %1499 = vmatprep.subr.mxu0 %v497
    %1500 = vmatpush1.msra.mxu0 %v496
    %1501 = vmatprep.subr.mxu0 %v501
    %1502 = vmatpush1.msra.mxu0 %v500
    %1503 = vmatprep.subr.mxu0 %v505
    %1504 = vmatpush1.msra.mxu0 %v504
    %1505 = vmatprep.subr.mxu0 %v509
    %1506 = vmatpush1.msra.mxu0 %v508
    %1507 = vmatprep.subr.mxu0 %v513
    %1508 = vmatpush1.msra.mxu0 %v512
    %1509 = vmatprep.subr.mxu0 %v517
    %1510 = vmatpush1.msra.mxu0 %v516
    %1511 = vmatprep.subr.mxu0 %v521
    %1512 = vmatpush1.msra.mxu0 %v520
    %1513 = vmatprep.subr.mxu0 %v525
    %1514 = vmatpush1.msra.mxu0 %v524
    %1515 = vmatprep.subr.mxu0 %v529
    %1516 = vmatpush1.msra.mxu0 %v528
    %1517 = vmatprep.subr.mxu0 %v533
    %1518 = vmatpush1.msra.mxu0 %v532
    %1519 = vmatprep.subr.mxu0 %v537
    %1520 = vmatpush1.msra.mxu0 %v536
    %1521 = vmatprep.subr.mxu0 %v541
    %1522 = vmatpush1.msra.mxu0 %v540
    %1523 = vmatprep.subr.mxu0 %v545
    %1524 = vmatpush1.msra.mxu0 %v544
    %1525 = vmatprep.subr.mxu0 %v549
    %1526 = vmatpush1.msra.mxu0 %v548
    %1527 = vmatprep.subr.mxu0 %v553
    %1528 = vmatpush1.msra.mxu0 %v552
    %1529 = vmatprep.subr.mxu0 %v557
    %1530 = vmatpush1.msra.mxu0 %v556
    %1531 = vmatprep.subr.mxu0 0.0
    %1532 = vmatpush1.msra.mxu0 0.0
    %1533 = vmatprep.subr.mxu0 0.0
    %1534 = vmatpush1.msra.mxu0 0.0
    %1535 = vmatprep.subr.mxu0 0.0
    %1536 = vmatpush1.msra.mxu0 0.0
    %1537 = vmatprep.subr.mxu0 0.0
    %1538 = vmatpush1.msra.mxu0 0.0
    %1539 = vmatprep.subr.mxu0 0.0
    %1540 = vmatpush1.msra.mxu0 0.0
    %1541 = vmatprep.subr.mxu0 0.0
    %1542 = vmatpush1.msra.mxu0 0.0
    %1543 = vmatprep.subr.mxu0 0.0
    %1544 = vmatpush1.msra.mxu0 0.0
    %1545 = vmatprep.subr.mxu0 0.0
    %1546 = vmatpush1.msra.mxu0 0.0
    %1547 = vmatprep.subr.mxu0 0.0
    %1548 = vmatpush1.msra.mxu0 0.0
    %1549 = vmatprep.subr.mxu0 0.0
    %1550 = vmatpush1.msra.mxu0 0.0
    %1551 = vmatprep.subr.mxu0 0.0
    %1552 = vmatpush1.msra.mxu0 0.0
    %1553 = vmatprep.subr.mxu0 0.0
    %1554 = vmatpush1.msra.mxu0 0.0
    %1555 = vmatprep.subr.mxu0 0.0
    %1556 = vmatpush1.msra.mxu0 0.0
    %1557 = vmatprep.subr.mxu0 0.0
    %1558 = vmatpush1.msra.mxu0 0.0
    %1559 = vmatprep.subr.mxu0 0.0
    %1560 = vmatpush1.msra.mxu0 0.0
    %1561 = vmatprep.subr.mxu0 0.0
    %1562 = vmatpush1.msra.mxu0 0.0
    %1563 = vmatprep.mubr.f32.mxu0 0.0
    %1564 = vmatmul.mubr.f32.gmra.mrb[0].mxu0 %v1423
    %v1565 = vpop.f32.mrb[0].mxu0
    %v1566 = vadd.f32 0.0, %v1565
    %v1567 = vpop.f32.mrb[0].mxu0
    %v1568 = vadd.f32 0.0, %v1567
    %1569 = vdwg.mxu0
    %v1570 = vadd.f32 %v1424, %v1495
    %v1571 = vadd.f32 %v1425, %v1497
    %v1572 = vadd.f32 %v1426, %v1566
    %v1573 = vadd.f32 %v1427, %v1568
    %v1574 = vxor.u32 %v1570, 2147483648
    %v1575 = vxor.u32 %v1571, 2147483648
    %v1576 = vxor.u32 %v1572, 2147483648
    %v1577 = vmul.f32 %v1574, 1.442695
    %v1578 = vpow.pop %v1577
    %v1579 = vmul.f32 %v1575, 1.442695
    %v1580 = vpow.pop %v1579
    %v1581 = vmul.f32 %v1576, 1.442695
    %v1582 = vpow.pop %v1581
    %v1583 = vadd.f32 %v1578, 1.0
    %v1584 = vadd.f32 %v1580, 1.0
    %v1585 = vadd.f32 %v1582, 1.0
    %v1586 = vrcp.pop %v1583
    %v1587 = vmul.f32 1.0, %v1586
    %v1588 = vrcp.pop %v1584
    %v1589 = vmul.f32 1.0, %v1588
    %v1590 = vrcp.pop %v1585
    %v1591 = vmul.f32 1.0, %v1590
    %v1592 = vtanh.pop %v1573
    %v1593 = vmul.f32 %v1589, %v1421
    %v1594 = vmul.f32 %v1587, %v1592
    %v1595 = vadd.f32 %v1593, %v1594
    %v1596 = vtanh.pop %v1595
    %v1597 = vmul.f32 %v1591, %v1596
    %v1598 = vld [vmem:[#allocation2 + $0xe0] sm:$0xff]
    %v1599 = vld [vmem:[#allocation2 + $0xe8] sm:$0xff]
    %v1600 = vld [vmem:[#allocation2 + $0xf0] sm:$0xff]
    %v1601 = vld [vmem:[#allocation2 + $0xf8] sm:$0xff]
    %1602 = vmatprep.subr.mxu0 %v495
    %1603 = vmatpush1.msra.mxu0 %v494
    %1604 = vmatprep.subr.mxu0 %v499
    %1605 = vmatpush1.msra.mxu0 %v498
    %1606 = vmatprep.subr.mxu0 %v503
    %1607 = vmatpush1.msra.mxu0 %v502
    %1608 = vmatprep.subr.mxu0 %v507
    %1609 = vmatpush1.msra.mxu0 %v506
    %1610 = vmatprep.subr.mxu0 %v511
    %1611 = vmatpush1.msra.mxu0 %v510
    %1612 = vmatprep.subr.mxu0 %v515
    %1613 = vmatpush1.msra.mxu0 %v514
    %1614 = vmatprep.subr.mxu0 %v519
    %1615 = vmatpush1.msra.mxu0 %v518
    %1616 = vmatprep.subr.mxu0 %v523
    %1617 = vmatpush1.msra.mxu0 %v522
    %1618 = vmatprep.subr.mxu0 %v527
    %1619 = vmatpush1.msra.mxu0 %v526
    %1620 = vmatprep.subr.mxu0 %v531
    %1621 = vmatpush1.msra.mxu0 %v530
    %1622 = vmatprep.subr.mxu0 %v535
    %1623 = vmatpush1.msra.mxu0 %v534
    %1624 = vmatprep.subr.mxu0 %v539
    %1625 = vmatpush1.msra.mxu0 %v538
    %1626 = vmatprep.subr.mxu0 %v543
    %1627 = vmatpush1.msra.mxu0 %v542
    %1628 = vmatprep.subr.mxu0 %v547
    %1629 = vmatpush1.msra.mxu0 %v546
    %1630 = vmatprep.subr.mxu0 %v551
    %1631 = vmatpush1.msra.mxu0 %v550
    %1632 = vmatprep.subr.mxu0 %v555
    %1633 = vmatpush1.msra.mxu0 %v554
    %1634 = vmatprep.subr.mxu0 0.0
    %1635 = vmatpush1.msra.mxu0 0.0
    %1636 = vmatprep.subr.mxu0 0.0
    %1637 = vmatpush1.msra.mxu0 0.0
    %1638 = vmatprep.subr.mxu0 0.0
    %1639 = vmatpush1.msra.mxu0 0.0
    %1640 = vmatprep.subr.mxu0 0.0
    %1641 = vmatpush1.msra.mxu0 0.0
    %1642 = vmatprep.subr.mxu0 0.0
    %1643 = vmatpush1.msra.mxu0 0.0
    %1644 = vmatprep.subr.mxu0 0.0
    %1645 = vmatpush1.msra.mxu0 0.0
    %1646 = vmatprep.subr.mxu0 0.0
    %1647 = vmatpush1.msra.mxu0 0.0
    %1648 = vmatprep.subr.mxu0 0.0
    %1649 = vmatpush1.msra.mxu0 0.0
    %1650 = vmatprep.subr.mxu0 0.0
    %1651 = vmatpush1.msra.mxu0 0.0
    %1652 = vmatprep.subr.mxu0 0.0
    %1653 = vmatpush1.msra.mxu0 0.0
    %1654 = vmatprep.subr.mxu0 0.0
    %1655 = vmatpush1.msra.mxu0 0.0
    %1656 = vmatprep.subr.mxu0 0.0
    %1657 = vmatpush1.msra.mxu0 0.0
    %1658 = vmatprep.subr.mxu0 0.0
    %1659 = vmatpush1.msra.mxu0 0.0
    %1660 = vmatprep.subr.mxu0 0.0
    %1661 = vmatpush1.msra.mxu0 0.0
    %1662 = vmatprep.subr.mxu0 0.0
    %1663 = vmatpush1.msra.mxu0 0.0
    %1664 = vmatprep.subr.mxu0 0.0
    %1665 = vmatpush1.msra.mxu0 0.0
    %1666 = vmatprep.mubr.f32.mxu0 0.0
    %1667 = vmatmul.mubr.f32.gmra.mrb[0].mxu0 %v1597
    %v1668 = vpop.f32.mrb[0].mxu0
    %v1669 = vadd.f32 0.0, %v1668
    %v1670 = vpop.f32.mrb[0].mxu0
    %v1671 = vadd.f32 0.0, %v1670
    %1672 = vdwg.mxu0
    %1673 = vmatprep.subr.mxu0 %v497
    %1674 = vmatpush1.msra.mxu0 %v496
    %1675 = vmatprep.subr.mxu0 %v501
    %1676 = vmatpush1.msra.mxu0 %v500
    %1677 = vmatprep.subr.mxu0 %v505
    %1678 = vmatpush1.msra.mxu0 %v504
    %1679 = vmatprep.subr.mxu0 %v509
    %1680 = vmatpush1.msra.mxu0 %v508
    %1681 = vmatprep.subr.mxu0 %v513
    %1682 = vmatpush1.msra.mxu0 %v512
    %1683 = vmatprep.subr.mxu0 %v517
    %1684 = vmatpush1.msra.mxu0 %v516
    %1685 = vmatprep.subr.mxu0 %v521
    %1686 = vmatpush1.msra.mxu0 %v520
    %1687 = vmatprep.subr.mxu0 %v525
    %1688 = vmatpush1.msra.mxu0 %v524
    %1689 = vmatprep.subr.mxu0 %v529
    %1690 = vmatpush1.msra.mxu0 %v528
    %1691 = vmatprep.subr.mxu0 %v533
    %1692 = vmatpush1.msra.mxu0 %v532
    %1693 = vmatprep.subr.mxu0 %v537
    %1694 = vmatpush1.msra.mxu0 %v536
    %1695 = vmatprep.subr.mxu0 %v541
    %1696 = vmatpush1.msra.mxu0 %v540
    %1697 = vmatprep.subr.mxu0 %v545
    %1698 = vmatpush1.msra.mxu0 %v544
    %1699 = vmatprep.subr.mxu0 %v549
    %1700 = vmatpush1.msra.mxu0 %v548
    %1701 = vmatprep.subr.mxu0 %v553
    %1702 = vmatpush1.msra.mxu0 %v552
    %1703 = vmatprep.subr.mxu0 %v557
    %1704 = vmatpush1.msra.mxu0 %v556
    %1705 = vmatprep.subr.mxu0 0.0
    %1706 = vmatpush1.msra.mxu0 0.0
    %1707 = vmatprep.subr.mxu0 0.0
    %1708 = vmatpush1.msra.mxu0 0.0
    %1709 = vmatprep.subr.mxu0 0.0
    %1710 = vmatpush1.msra.mxu0 0.0
    %1711 = vmatprep.subr.mxu0 0.0
    %1712 = vmatpush1.msra.mxu0 0.0
    %1713 = vmatprep.subr.mxu0 0.0
    %1714 = vmatpush1.msra.mxu0 0.0
    %1715 = vmatprep.subr.mxu0 0.0
    %1716 = vmatpush1.msra.mxu0 0.0
    %1717 = vmatprep.subr.mxu0 0.0
    %1718 = vmatpush1.msra.mxu0 0.0
    %1719 = vmatprep.subr.mxu0 0.0
    %1720 = vmatpush1.msra.mxu0 0.0
    %1721 = vmatprep.subr.mxu0 0.0
    %1722 = vmatpush1.msra.mxu0 0.0
    %1723 = vmatprep.subr.mxu0 0.0
    %1724 = vmatpush1.msra.mxu0 0.0
    %1725 = vmatprep.subr.mxu0 0.0
    %1726 = vmatpush1.msra.mxu0 0.0
    %1727 = vmatprep.subr.mxu0 0.0
    %1728 = vmatpush1.msra.mxu0 0.0
    %1729 = vmatprep.subr.mxu0 0.0
    %1730 = vmatpush1.msra.mxu0 0.0
    %1731 = vmatprep.subr.mxu0 0.0
    %1732 = vmatpush1.msra.mxu0 0.0
    %1733 = vmatprep.subr.mxu0 0.0
    %1734 = vmatpush1.msra.mxu0 0.0
    %1735 = vmatprep.subr.mxu0 0.0
    %1736 = vmatpush1.msra.mxu0 0.0
    %1737 = vmatprep.mubr.f32.mxu0 0.0
    %1738 = vmatmul.mubr.f32.gmra.mrb[0].mxu0 %v1597
    %v1739 = vpop.f32.mrb[0].mxu0
    %v1740 = vadd.f32 0.0, %v1739
    %v1741 = vpop.f32.mrb[0].mxu0
    %v1742 = vadd.f32 0.0, %v1741
    %1743 = vdwg.mxu0
    %v1744 = vadd.f32 %v1598, %v1669
    %v1745 = vadd.f32 %v1599, %v1671
    %v1746 = vadd.f32 %v1600, %v1740
    %v1747 = vadd.f32 %v1601, %v1742
    %v1748 = vxor.u32 %v1744, 2147483648
    %v1749 = vxor.u32 %v1745, 2147483648
    %v1750 = vxor.u32 %v1746, 2147483648
    %v1751 = vmul.f32 %v1748, 1.442695
    %v1752 = vpow.pop %v1751
    %v1753 = vmul.f32 %v1749, 1.442695
    %v1754 = vpow.pop %v1753
    %v1755 = vmul.f32 %v1750, 1.442695
    %v1756 = vpow.pop %v1755
    %v1757 = vadd.f32 %v1752, 1.0
    %v1758 = vadd.f32 %v1754, 1.0
    %v1759 = vadd.f32 %v1756, 1.0
    %v1760 = vrcp.pop %v1757
    %v1761 = vmul.f32 1.0, %v1760
    %v1762 = vrcp.pop %v1758
    %v1763 = vmul.f32 1.0, %v1762
    %v1764 = vrcp.pop %v1759
    %v1765 = vmul.f32 1.0, %v1764
    %v1766 = vtanh.pop %v1747
    %v1767 = vmul.f32 %v1763, %v1595
    %v1768 = vmul.f32 %v1761, %v1766
    %v1769 = vadd.f32 %v1767, %v1768
    %v1770 = vtanh.pop %v1769
    %v1771 = vmul.f32 %v1765, %v1770
    %v1772 = vld [vmem:[%s5] sm:$0xff]
    %v1773 = vld [vmem:[%s5 + $0x8] sm:$0xff]
    %v1774 = vld [vmem:[%s5 + $0x10] sm:$0xff]
    %v1775 = vld [vmem:[%s5 + $0x18] sm:$0xff]
    %v1776 = vld [vmem:[%s5 + $0x20] sm:$0xff]
    %v1777 = vld [vmem:[%s5 + $0x28] sm:$0xff]
    %v1778 = vld [vmem:[%s5 + $0x30] sm:$0xff]
    %v1779 = vld [vmem:[%s5 + $0x38] sm:$0xff]
    %v1780 = vld [vmem:[%s5 + $0x40] sm:$0xff]
    %v1781 = vld [vmem:[%s5 + $0x48] sm:$0xff]
    %v1782 = vld [vmem:[%s5 + $0x50] sm:$0xff]
    %v1783 = vld [vmem:[%s5 + $0x58] sm:$0xff]
    %v1784 = vld [vmem:[%s5 + $0x60] sm:$0xff]
    %v1785 = vld [vmem:[%s5 + $0x68] sm:$0xff]
    %v1786 = vld [vmem:[%s5 + $0x70] sm:$0xff]
    %v1787 = vld [vmem:[%s5 + $0x78] sm:$0xff]
    %1788 = vmatprep.subr.mxu0 0.0
    %1789 = vmatpush1.msra.mxu0 %v1772
    %1790 = vmatprep.subr.mxu0 0.0
    %1791 = vmatpush1.msra.mxu0 %v1773
    %1792 = vmatprep.subr.mxu0 0.0
    %1793 = vmatpush1.msra.mxu0 %v1774
    %1794 = vmatprep.subr.mxu0 0.0
    %1795 = vmatpush1.msra.mxu0 %v1775
    %1796 = vmatprep.subr.mxu0 0.0
    %1797 = vmatpush1.msra.mxu0 %v1776
    %1798 = vmatprep.subr.mxu0 0.0
    %1799 = vmatpush1.msra.mxu0 %v1777
    %1800 = vmatprep.subr.mxu0 0.0
    %1801 = vmatpush1.msra.mxu0 %v1778
    %1802 = vmatprep.subr.mxu0 0.0
    %1803 = vmatpush1.msra.mxu0 %v1779
    %1804 = vmatprep.subr.mxu0 0.0
    %1805 = vmatpush1.msra.mxu0 %v1780
    %1806 = vmatprep.subr.mxu0 0.0
    %1807 = vmatpush1.msra.mxu0 %v1781
    %1808 = vmatprep.subr.mxu0 0.0
    %1809 = vmatpush1.msra.mxu0 %v1782
    %1810 = vmatprep.subr.mxu0 0.0
    %1811 = vmatpush1.msra.mxu0 %v1783
    %1812 = vmatprep.subr.mxu0 0.0
    %1813 = vmatpush1.msra.mxu0 %v1784
    %1814 = vmatprep.subr.mxu0 0.0
    %1815 = vmatpush1.msra.mxu0 %v1785
    %1816 = vmatprep.subr.mxu0 0.0
    %1817 = vmatpush1.msra.mxu0 %v1786
    %1818 = vmatprep.subr.mxu0 0.0
    %1819 = vmatpush1.msra.mxu0 %v1787
    %1820 = vmatprep.subr.mxu0 0.0
    %1821 = vmatpush1.msra.mxu0 0.0
    %1822 = vmatprep.subr.mxu0 0.0
    %1823 = vmatpush1.msra.mxu0 0.0
    %1824 = vmatprep.subr.mxu0 0.0
    %1825 = vmatpush1.msra.mxu0 0.0
    %1826 = vmatprep.subr.mxu0 0.0
    %1827 = vmatpush1.msra.mxu0 0.0
    %1828 = vmatprep.subr.mxu0 0.0
    %1829 = vmatpush1.msra.mxu0 0.0
    %1830 = vmatprep.subr.mxu0 0.0
    %1831 = vmatpush1.msra.mxu0 0.0
    %1832 = vmatprep.subr.mxu0 0.0
    %1833 = vmatpush1.msra.mxu0 0.0
    %1834 = vmatprep.subr.mxu0 0.0
    %1835 = vmatpush1.msra.mxu0 0.0
    %1836 = vmatprep.subr.mxu0 0.0
    %1837 = vmatpush1.msra.mxu0 0.0
    %1838 = vmatprep.subr.mxu0 0.0
    %1839 = vmatpush1.msra.mxu0 0.0
    %1840 = vmatprep.subr.mxu0 0.0
    %1841 = vmatpush1.msra.mxu0 0.0
    %1842 = vmatprep.subr.mxu0 0.0
    %1843 = vmatpush1.msra.mxu0 0.0
    %1844 = vmatprep.subr.mxu0 0.0
    %1845 = vmatpush1.msra.mxu0 0.0
    %1846 = vmatprep.subr.mxu0 0.0
    %1847 = vmatpush1.msra.mxu0 0.0
    %1848 = vmatprep.subr.mxu0 0.0
    %1849 = vmatpush1.msra.mxu0 0.0
    %1850 = vmatprep.subr.mxu0 0.0
    %1851 = vmatpush1.msra.mxu0 0.0
    %1852 = vmatprep.mubr.f32.mxu0 0.0
    %1853 = vmatmul.mubr.f32.gmra.mrb[0].mxu0 %v1771
    %v1854 = vpop.f32.mrb[0].mxu0
    %v1855 = vadd.f32 %v468, %v1854
    %v1856 = vpop.f32.mrb[0].mxu0
    %1857 = vdwg.mxu0
    %v1858 = vmax.f32 %v1855, 0.0
    %v1859 = vld [vmem:[%s8] sm:$0xff]
    %v1860 = vld [vmem:[%s8 + $0x8] sm:$0xff]
    %v1861 = vld [vmem:[%s8 + $0x10] sm:$0xff]
    %v1862 = vld [vmem:[%s8 + $0x18] sm:$0xff]
    %v1863 = vld [vmem:[%s8 + $0x20] sm:$0xff]
    %v1864 = vld [vmem:[%s8 + $0x28] sm:$0xff]
    %v1865 = vld [vmem:[%s8 + $0x30] sm:$0xff]
    %v1866 = vld [vmem:[%s8 + $0x38] sm:$0xff]
    %v1867 = vld [vmem:[%s9] sm:$0x1]
    %v1869 = vlaneseq
    %v1870 = vshrl.u32 %v1869, 7
    %v1871 = vsub.s32 0, %v1870
    %v1872 = vrot.slane %v1867, %v1871
    %vm1874 = vcmask 523264
    %v1876 = vsel %vm1874, %v1858, 0
    %1878 = vmatprep.subr.mxu0 0.0
    %1879 = vmatpush1.msra.mxu0 %v1859
    %1880 = vmatprep.subr.mxu0 0.0
    %1881 = vmatpush1.msra.mxu0 %v1860
    %1882 = vmatprep.subr.mxu0 0.0
    %1883 = vmatpush1.msra.mxu0 %v1861
    %1884 = vmatprep.subr.mxu0 0.0
    %1885 = vmatpush1.msra.mxu0 %v1862
    %1886 = vmatprep.subr.mxu0 0.0
    %1887 = vmatpush1.msra.mxu0 %v1863
    %1888 = vmatprep.subr.mxu0 0.0
    %1889 = vmatpush1.msra.mxu0 %v1864
    %1890 = vmatprep.subr.mxu0 0.0
    %1891 = vmatpush1.msra.mxu0 %v1865
    %1892 = vmatprep.subr.mxu0 0.0
    %1893 = vmatpush1.msra.mxu0 %v1866
    %1894 = vmatprep.subr.mxu0 0.0
    %1895 = vmatpush1.msra.mxu0 0.0
    %1896 = vmatprep.subr.mxu0 0.0
    %1897 = vmatpush1.msra.mxu0 0.0
    %1898 = vmatprep.subr.mxu0 0.0
    %1899 = vmatpush1.msra.mxu0 0.0
    %1900 = vmatprep.subr.mxu0 0.0
    %1901 = vmatpush1.msra.mxu0 0.0
    %1902 = vmatprep.subr.mxu0 0.0
    %1903 = vmatpush1.msra.mxu0 0.0
    %1904 = vmatprep.subr.mxu0 0.0
    %1905 = vmatpush1.msra.mxu0 0.0
    %1906 = vmatprep.subr.mxu0 0.0
    %1907 = vmatpush1.msra.mxu0 0.0
    %1908 = vmatprep.subr.mxu0 0.0
    %1909 = vmatpush1.msra.mxu0 0.0
    %1910 = vmatprep.subr.mxu0 0.0
    %1911 = vmatpush1.msra.mxu0 0.0
    %1912 = vmatprep.subr.mxu0 0.0
    %1913 = vmatpush1.msra.mxu0 0.0
    %1914 = vmatprep.subr.mxu0 0.0
    %1915 = vmatpush1.msra.mxu0 0.0
    %1916 = vmatprep.subr.mxu0 0.0
    %1917 = vmatpush1.msra.mxu0 0.0
    %1918 = vmatprep.subr.mxu0 0.0
    %1919 = vmatpush1.msra.mxu0 0.0
    %1920 = vmatprep.subr.mxu0 0.0
    %1921 = vmatpush1.msra.mxu0 0.0
    %1922 = vmatprep.subr.mxu0 0.0
    %1923 = vmatpush1.msra.mxu0 0.0
    %1924 = vmatprep.subr.mxu0 0.0
    %1925 = vmatpush1.msra.mxu0 0.0
    %1926 = vmatprep.subr.mxu0 0.0
    %1927 = vmatpush1.msra.mxu0 0.0
    %1928 = vmatprep.subr.mxu0 0.0
    %1929 = vmatpush1.msra.mxu0 0.0
    %1930 = vmatprep.subr.mxu0 0.0
    %1931 = vmatpush1.msra.mxu0 0.0
    %1932 = vmatprep.subr.mxu0 0.0
    %1933 = vmatpush1.msra.mxu0 0.0
    %1934 = vmatprep.subr.mxu0 0.0
    %1935 = vmatpush1.msra.mxu0 0.0
    %1936 = vmatprep.subr.mxu0 0.0
    %1937 = vmatpush1.msra.mxu0 0.0
    %1938 = vmatprep.subr.mxu0 0.0
    %1939 = vmatpush1.msra.mxu0 0.0
    %1940 = vmatprep.subr.mxu0 0.0
    %1941 = vmatpush1.msra.mxu0 0.0
    %1942 = vmatprep.mubr.f32.mxu0 0.0
    %1943 = vmatmul.mubr.f32.gmra.mrb[0].mxu0 %v1876
    %v1944 = vpop.f32.mrb[0].mxu0
    %v1945 = vadd.f32 %v1872, %v1944
    %v1946 = vpop.f32.mrb[0].mxu0
    %1947 = vdwg.mxu0
    %v1948 = vmax.f32 %v1945, 0.0
    %v1949 = vld [vmem:[%s10] sm:$0xff]
    %v1950 = vld [vmem:[%s10 + $0x8] sm:$0xff]
    %v1951 = vld [vmem:[%s10 + $0x10] sm:$0xff]
    %v1952 = vld [vmem:[%s10 + $0x18] sm:$0xff]
    %v1953 = vld [vmem:[%s10 + $0x20] sm:$0xff]
    %v1954 = vld [vmem:[%s10 + $0x28] sm:$0xff]
    %v1955 = vld [vmem:[%s10 + $0x30] sm:$0xff]
    %v1956 = vld [vmem:[%s10 + $0x38] sm:$0xff]
    %v1957 = vld [vmem:[%s11] sm:$0x1]
    %v1959 = vlaneseq
    %v1960 = vshrl.u32 %v1959, 7
    %v1961 = vsub.s32 0, %v1960
    %v1962 = vrot.slane %v1957, %v1961
    %v1965 = vsel %vm1874, %v1948, 0
    %1967 = vmatprep.subr.mxu0 0.0
    %1968 = vmatpush1.msra.mxu0 %v1949
    %1969 = vmatprep.subr.mxu0 0.0
    %1970 = vmatpush1.msra.mxu0 %v1950
    %1971 = vmatprep.subr.mxu0 0.0
    %1972 = vmatpush1.msra.mxu0 %v1951
    %1973 = vmatprep.subr.mxu0 0.0
    %1974 = vmatpush1.msra.mxu0 %v1952
    %1975 = vmatprep.subr.mxu0 0.0
    %1976 = vmatpush1.msra.mxu0 %v1953
    %1977 = vmatprep.subr.mxu0 0.0
    %1978 = vmatpush1.msra.mxu0 %v1954
    %1979 = vmatprep.subr.mxu0 0.0
    %1980 = vmatpush1.msra.mxu0 %v1955
    %1981 = vmatprep.subr.mxu0 0.0
    %1982 = vmatpush1.msra.mxu0 %v1956
    %1983 = vmatprep.subr.mxu0 0.0
    %1984 = vmatpush1.msra.mxu0 0.0
    %1985 = vmatprep.subr.mxu0 0.0
    %1986 = vmatpush1.msra.mxu0 0.0
    %1987 = vmatprep.subr.mxu0 0.0
    %1988 = vmatpush1.msra.mxu0 0.0
    %1989 = vmatprep.subr.mxu0 0.0
    %1990 = vmatpush1.msra.mxu0 0.0
    %1991 = vmatprep.subr.mxu0 0.0
    %1992 = vmatpush1.msra.mxu0 0.0
    %1993 = vmatprep.subr.mxu0 0.0
    %1994 = vmatpush1.msra.mxu0 0.0
    %1995 = vmatprep.subr.mxu0 0.0
    %1996 = vmatpush1.msra.mxu0 0.0
    %1997 = vmatprep.subr.mxu0 0.0
    %1998 = vmatpush1.msra.mxu0 0.0
    %1999 = vmatprep.subr.mxu0 0.0
    %2000 = vmatpush1.msra.mxu0 0.0
    %2001 = vmatprep.subr.mxu0 0.0
    %2002 = vmatpush1.msra.mxu0 0.0
    %2003 = vmatprep.subr.mxu0 0.0
    %2004 = vmatpush1.msra.mxu0 0.0
    %2005 = vmatprep.subr.mxu0 0.0
    %2006 = vmatpush1.msra.mxu0 0.0
    %2007 = vmatprep.subr.mxu0 0.0
    %2008 = vmatpush1.msra.mxu0 0.0
    %2009 = vmatprep.subr.mxu0 0.0
    %2010 = vmatpush1.msra.mxu0 0.0
    %2011 = vmatprep.subr.mxu0 0.0
    %2012 = vmatpush1.msra.mxu0 0.0
    %2013 = vmatprep.subr.mxu0 0.0
    %2014 = vmatpush1.msra.mxu0 0.0
    %2015 = vmatprep.subr.mxu0 0.0
    %2016 = vmatpush1.msra.mxu0 0.0
    %2017 = vmatprep.subr.mxu0 0.0
    %2018 = vmatpush1.msra.mxu0 0.0
    %2019 = vmatprep.subr.mxu0 0.0
    %2020 = vmatpush1.msra.mxu0 0.0
    %2021 = vmatprep.subr.mxu0 0.0
    %2022 = vmatpush1.msra.mxu0 0.0
    %2023 = vmatprep.subr.mxu0 0.0
    %2024 = vmatpush1.msra.mxu0 0.0
    %2025 = vmatprep.subr.mxu0 0.0
    %2026 = vmatpush1.msra.mxu0 0.0
    %2027 = vmatprep.subr.mxu0 0.0
    %2028 = vmatpush1.msra.mxu0 0.0
    %2029 = vmatprep.subr.mxu0 0.0
    %2030 = vmatpush1.msra.mxu0 0.0
    %2031 = vmatprep.mubr.f32.mxu0 0.0
    %2032 = vmatmul.mubr.f32.gmra.mrb[0].mxu0 %v1965
    %v2033 = vpop.f32.mrb[0].mxu0
    %v2034 = vadd.f32 %v1962, %v2033
    %v2035 = vpop.f32.mrb[0].mxu0
    %2036 = vdwg.mxu0
    %2037 = vst [vmem:[#allocation6] sm:$0xff] %v2034
    // Predicated region
    $region54: #{tpu_custom_call.1} parent=1 // pred_check
      _
    $region55: #{tpu_custom_call.1} parent=1 // pred_check_branch
      %2039 = sbr.rel (0) target = $region57
    $region56: #{tpu_custom_call.1} parent=1 // pred_region
      %s2041 = ssub.s32 128, 128
      %2042 = vsyncadd [#allocation5], %s2041
      %s2044 = sshll.u32 [#allocation6], 4
      %s2045 = int_to_ptr.vmem [resolvable:$true] %s2044
      %2047 = dma.vmem_to_hbm [thread:$0]  %s2045, 128, %s12, [#allocation5]
    $region57: #{tpu_custom_call.1} parent=1 // pred_fallthru
      _
    // Predicated region
    $region58: #{tpu_custom_call.1} parent=1 // pred_check
      _
    $region59: #{tpu_custom_call.1} parent=1 // pred_check_branch
      %2049 = sbr.rel (0) target = $region61
    $region60: #{tpu_custom_call.1} parent=1 // pred_region
      %2050 = dma.done [#allocation5], 128
    $region61: #{tpu_custom_call.1} parent=1 // pred_fallthru
      _
    %2051 = vsyncpa [#allocation4], 1
    %2052 = vsyncpa [#allocation5], 1

</llo_original>
